<compile_context>
chip_gen: v5e
topology: v5e:2x2
jax: 0.10.0
libtpu: 0.0.40
codegen_flags: <defaults>
</compile_context>

<pallas_src>
import functools

import jax
import jax.numpy as jnp
from jax import lax
from jax.experimental import pallas as pl
from jax.experimental.pallas import tpu as pltpu


def _multibox_kernel(boxes_ref, labels_ref, pxy_ref, pcxcy_ref, ploc_ref, pscore_ref,
                     out_ref, *, n_objects, threshold):
    b = pl.program_id(0)
    S, L = pxy_ref.shape[1], pxy_ref.shape[2]
    P = S * L
    C = pscore_ref.shape[1]

    # Prior geometry, hoisted once per image.
    p_xmin = pxy_ref[0]
    p_ymin = pxy_ref[1]
    p_xmax = pxy_ref[2]
    p_ymax = pxy_ref[3]
    p_area = (p_xmax - p_xmin) * (p_ymax - p_ymin)

    # Flat prior index tile, hoisted out of the object loop.
    flat_idx = (lax.broadcasted_iota(jnp.int32, (S, L), 0) * L
                + lax.broadcasted_iota(jnp.int32, (S, L), 1))

    def body(j, carry):
        best_ov, lab, t0, t1, t2, t3, cnt = carry
        bxmin = boxes_ref[b, 4 * j + 0]
        bymin = boxes_ref[b, 4 * j + 1]
        bxmax = boxes_ref[b, 4 * j + 2]
        bymax = boxes_ref[b, 4 * j + 3]
        lj = labels_ref[b, j]

        # Jaccard overlap of object j with every prior.
        iw = jnp.maximum(jnp.minimum(p_xmax, bxmax) - jnp.maximum(p_xmin, bxmin), 0.0)
        ih = jnp.maximum(jnp.minimum(p_ymax, bymax) - jnp.maximum(p_ymin, bymin), 0.0)
        inter = iw * ih
        b_area = (bxmax - bxmin) * (bymax - bymin)
        iou = inter / (b_area + p_area - inter)

        # Per-prior argmax over objects, with the matched label / gt box gathered in
        # the same select (replaces the separate gather loop of the reference).
        take = iou > best_ov
        best_ov = jnp.where(take, iou, best_ov)
        lab = jnp.where(take, lj, lab)
        t0 = jnp.where(take, bxmin, t0)
        t1 = jnp.where(take, bymin, t1)
        t2 = jnp.where(take, bxmax, t2)
        t3 = jnp.where(take, bymax, t3)

        # Force-match this object's best prior (only if its best overlap > 0).
        # The object index written is its position in the *filtered* object list
        # (PyTorch quirk), i.e. the running counter `cnt`; the forced overlap of 1.0
        # can never be beaten by later strictly-greater updates, so applying it here
        # is exactly equivalent to the reference's two-pass ordering.
        mv = jnp.max(iou)
        bp = jnp.min(jnp.where(iou == mv, flat_idx, P))
        cond = mv > 0.0
        sel = jnp.logical_and(flat_idx == bp, cond)
        best_ov = jnp.where(sel, 1.0, best_ov)
        lab = jnp.where(sel, labels_ref[b, cnt], lab)
        t0 = jnp.where(sel, boxes_ref[b, 4 * cnt + 0], t0)
        t1 = jnp.where(sel, boxes_ref[b, 4 * cnt + 1], t1)
        t2 = jnp.where(sel, boxes_ref[b, 4 * cnt + 2], t2)
        t3 = jnp.where(sel, boxes_ref[b, 4 * cnt + 3], t3)
        cnt = cnt + cond.astype(jnp.int32)
        return best_ov, lab, t0, t1, t2, t3, cnt

    init = (jnp.full((S, L), -1.0, jnp.float32),          # overlap_for_each_prior
            jnp.zeros((S, L), jnp.int32),                  # matched label
            jnp.zeros((S, L), jnp.float32),                # matched box xmin
            jnp.zeros((S, L), jnp.float32),                # matched box ymin
            jnp.zeros((S, L), jnp.float32),                # matched box xmax
            jnp.zeros((S, L), jnp.float32),                # matched box ymax
            jnp.zeros((), jnp.int32))                      # filtered-object counter
    unroll = n_objects if n_objects <= 8 else 4
    best_ov, lab, t0, t1, t2, t3, _ = lax.fori_loop(0, n_objects, body, init,
                                                    unroll=unroll)

    # Threshold masks (true_classes / true_neg_classes).
    true_cls = jnp.where(best_ov < threshold, 0, lab)                 # int32 (S, L)
    neg_flag = (best_ov < (threshold - 0.1)).astype(jnp.float32)      # true_neg == -1
    pos = true_cls > 0

    # Encode matched boxes (xy -> cxcy -> gcxgcy); prior-only reciprocals hoisted (EUP).
    pcx = pcxcy_ref[0]
    pcy = pcxcy_ref[1]
    inv_pw = 1.0 / pcxcy_ref[2]
    inv_ph = 1.0 / pcxcy_ref[3]
    tcx = (t0 + t2) * 0.5
    tcy = (t1 + t3) * 0.5
    tw = t2 - t0
    th = t3 - t1
    g0 = (tcx - pcx) * (10.0 * inv_pw)
    g1 = (tcy - pcy) * (10.0 * inv_ph)
    g2 = jnp.log(tw * inv_pw) * 5.0
    g3 = jnp.log(th * inv_ph) * 5.0

    # SmoothL1 (beta=1) vs predicted offsets, summed over the 4 coords and pre-masked
    # by the positive mask (only positives contribute to the reference loc loss).
    sl1 = jnp.zeros((S, L), jnp.float32)
    for k, g in enumerate((g0, g1, g2, g3)):
        d = ploc_ref[0, k] - g
        ad = jnp.abs(d)
        sl1 = sl1 + jnp.where(ad < 1.0, 0.5 * d * d, ad - 0.5)
    sl1 = jnp.where(pos, sl1, 0.0)

    # Per-prior cross entropy against the matched class (streamed per class slice to
    # stay register-light for large class counts).
    mx = pscore_ref[0, 0]
    for c in range(1, C):
        mx = jnp.maximum(mx, pscore_ref[0, c])
    sum_exp = jnp.zeros((S, L), jnp.float32)
    tgt = jnp.zeros((S, L), jnp.float32)
    for c in range(C):
        lc = pscore_ref[0, c]
        sum_exp = sum_exp + jnp.exp(lc - mx)
        tgt = tgt + jnp.where(true_cls == c, lc, 0.0)
    ce = mx + jnp.log(sum_exp) - tgt

    # Single merged, sublane-dense output block: [ce, smooth_l1(pos-masked), true_cls, neg].
    out_ref[0, 0] = ce
    out_ref[0, 1] = sl1
    out_ref[0, 2] = true_cls.astype(jnp.float32)
    out_ref[0, 3] = neg_flag


def multibox_loss_512(predicted_locs, predicted_scores, boxes, labels, priors_cxcy,
                      threshold=0.5, neg_pos_ratio=3, alpha=1.0):
    """predicted_locs (N,P,4), predicted_scores (N,P,C), boxes (N,n_obj,4) corner coords,
    labels (N,n_obj) int (>=1), priors_cxcy (P,4). Returns the scalar multibox loss."""
    N, P, _ = predicted_locs.shape
    C = predicted_scores.shape[2]
    n_objects = boxes.shape[1]
    assert P % 128 == 0, "prior count must be padded to a multiple of 128"
    S = P // 128

    priors_cxcy = jnp.asarray(priors_cxcy, jnp.float32)
    priors_xy = jnp.concatenate(
        [priors_cxcy[:, :2] - priors_cxcy[:, 2:] / 2.0,
         priors_cxcy[:, :2] + priors_cxcy[:, 2:] / 2.0], axis=1)      # cxcy_to_xy

    pxy = priors_xy.T.reshape(4, S, 128)
    pcxcy = priors_cxcy.T.reshape(4, S, 128)
    # TODO(synk): if the upstream detection head can emit channel-major (N, 4/C, P)
    # layouts directly, these two transposes (an extra HBM round-trip of the score
    # tensor) disappear.
    ploc = jnp.transpose(predicted_locs.astype(jnp.float32), (0, 2, 1)).reshape(N, 4, S, 128)
    pscore = jnp.transpose(predicted_scores.astype(jnp.float32), (0, 2, 1)).reshape(N, C, S, 128)
    boxes_flat = boxes.astype(jnp.float32).reshape(N, n_objects * 4)
    labels_i = labels.astype(jnp.int32)

    kernel = functools.partial(_multibox_kernel, n_objects=n_objects,
                               threshold=float(threshold))
    grid_spec = pltpu.PrefetchScalarGridSpec(
        num_scalar_prefetch=0,
        grid=(N,),
        in_specs=[
            pl.BlockSpec(memory_space=pltpu.MemorySpace.SMEM),        # boxes  (N, n_obj*4)
            pl.BlockSpec(memory_space=pltpu.MemorySpace.SMEM),        # labels (N, n_obj)
            pl.BlockSpec((4, S, 128), lambda b: (0, 0, 0)),           # priors_xy   (4, S, 128)
            pl.BlockSpec((4, S, 128), lambda b: (0, 0, 0)),           # priors_cxcy (4, S, 128)
            pl.BlockSpec((1, 4, S, 128), lambda b: (b, 0, 0, 0)),     # pred locs   (N, 4, S, 128)
            pl.BlockSpec((1, C, S, 128), lambda b: (b, 0, 0, 0)),     # pred scores (N, C, S, 128)
        ],
        out_specs=pl.BlockSpec((1, 4, S, 128), lambda b: (b, 0, 0, 0)),
    )
    cost = pl.CostEstimate(
        flops=int(N * P * (30 * n_objects + 8 * C + 40)),
        transcendentals=int(N * P * (C + 6)),
        bytes_accessed=int(4 * (N * P * (C + 4 + 4) + 8 * P + N * n_objects * 5)),
    )
    out = pl.pallas_call(
        kernel,
        out_shape=jax.ShapeDtypeStruct((N, 4, S, 128), jnp.float32),
        grid_spec=grid_spec,
        compiler_params=pltpu.CompilerParams(
            dimension_semantics=("parallel",),            # images are independent (v7x 2-TC)
            vmem_limit_bytes=32 * 1024 * 1024,            # > v5e's 16 MiB default scoped limit
        ),
        cost_estimate=cost,
    )(boxes_flat, labels_i, pxy, pcxcy, ploc, pscore)

    out = out.reshape(N, 4, P)
    ce = out[:, 0]
    sl1 = out[:, 1]          # already masked by the positive mask inside the kernel
    true_cls = out[:, 2]
    _neg = out[:, 3]         # true_neg_classes == -1 mask (only used by the focal branch)

    pos = true_cls > 0.5
    n_positives = jnp.sum(pos, axis=1)                                # (N,)
    n_pos_total = jnp.maximum(jnp.sum(n_positives).astype(jnp.float32), 1.0)

    # localization loss: SmoothL1(reduction='mean') over the (n_pos, 4) positive offsets
    loc_loss = jnp.sum(sl1) / (4.0 * n_pos_total)

    # confidence loss: cross entropy with hard-negative mining
    # TODO(synk): replace the exact full descending sort with lax.top_k once a static
    # upper bound on neg_pos_ratio * n_positives is available.
    n_hard_negatives = neg_pos_ratio * n_positives
    conf_loss_pos = jnp.sum(jnp.where(pos, ce, 0.0))
    conf_loss_neg = jnp.where(pos, 0.0, ce)
    conf_loss_neg = -jnp.sort(-conf_loss_neg, axis=1)                 # sort descending
    ranks = jnp.arange(P)[None, :]
    hard_negatives = ranks < n_hard_negatives[:, None]
    conf_loss_hard_neg = jnp.sum(jnp.where(hard_negatives, conf_loss_neg, 0.0))
    conf_loss = (conf_loss_hard_neg + conf_loss_pos) / n_pos_total

    return conf_loss + alpha * loc_loss


if __name__ == "__main__":
    key = jax.random.PRNGKey(0)
    # small stand-ins for (N, 22536 priors, n_classes); P chosen so S = P/128 = 8 sublanes
    N, P, C, n_obj = 2, 1024, 8, 6

    # deterministic 32x32 grid of priors in (cx, cy, w, h) -> P = 1024
    gx, gy = jnp.meshgrid((jnp.arange(32) + 0.5) / 32.0,
                          (jnp.arange(32) + 0.5) / 32.0, indexing="ij")
    priors_cxcy = jnp.stack([gx.reshape(-1), gy.reshape(-1),
                             jnp.full((P,), 0.15), jnp.full((P,), 0.15)], axis=1)

    k1, k2, k3, k4, k5 = jax.random.split(key, 5)
    predicted_locs = jax.random.normal(k1, (N, P, 4), jnp.float32)
    predicted_scores = jax.random.normal(k2, (N, P, C), jnp.float32)

    cxy = jax.random.uniform(k3, (N, n_obj, 2), minval=0.25, maxval=0.75)
    wh = jax.random.uniform(k4, (N, n_obj, 2), minval=0.1, maxval=0.4)
    boxes = jnp.clip(jnp.concatenate([cxy - wh / 2.0, cxy + wh / 2.0], axis=-1), 0.0, 1.0)
    labels = jax.random.randint(k5, (N, n_obj), 1, C)                 # object classes >= 1

    loss = multibox_loss_512(predicted_locs, predicted_scores, boxes, labels, priors_cxcy,
                             threshold=0.5, neg_pos_ratio=3, alpha=1.0)
    loss = jax.block_until_ready(loss)
    assert bool(jnp.isfinite(loss)), loss
    print("KERNEL_OK")
</pallas_src>

<mosaic_0001>
module attributes {stable_mosaic.version = 11 : i64} {
  func.func @_multibox_kernel(%arg0: i32, %arg1: memref<2x24xf32, #tpu.memory_space<smem>>, %arg2: memref<2x6xi32, #tpu.memory_space<smem>>, %arg3: memref<4x8x128xf32, #tpu.memory_space<vmem>>, %arg4: memref<4x8x128xf32, #tpu.memory_space<vmem>>, %arg5: memref<1x4x8x128xf32, #tpu.memory_space<vmem>>, %arg6: memref<1x8x8x128xf32, #tpu.memory_space<vmem>>, %arg7: memref<1x4x8x128xf32, #tpu.memory_space<vmem>>) attributes {dimension_semantics = [#tpu.dimension_semantics<parallel>], iteration_bounds = array<i64: 2>, scalar_prefetch = 0 : i64, scratch_operands = 0 : i64, tpu.core_type = #tpu.core_type<tc>, window_params = [{transform_indices = @transform_0, window_bounds = array<i64: 2, 24>}, {transform_indices = @transform_1, window_bounds = array<i64: 2, 6>}, {pipeline_mode = #tpu.pipeline_mode<synchronous>, transform_indices = @transform_2, window_bounds = array<i64: 4, 8, 128>}, {pipeline_mode = #tpu.pipeline_mode<synchronous>, transform_indices = @transform_3, window_bounds = array<i64: 4, 8, 128>}, {transform_indices = @transform_4, window_bounds = array<i64: 1, 4, 8, 128>}, {transform_indices = @transform_5, window_bounds = array<i64: 1, 8, 8, 128>}, {transform_indices = @transform_6, window_bounds = array<i64: 1, 4, 8, 128>}]} {
    %c0 = arith.constant 0 : index
    %c0_0 = arith.constant 0 : index
    %c0_1 = arith.constant 0 : index
    %0 = vector.load %arg3[%c0, %c0_0, %c0_1] : memref<4x8x128xf32, #tpu.memory_space<vmem>>, vector<1x8x128xf32>
    %1 = vector.shape_cast %0 : vector<1x8x128xf32> to vector<8x128xf32>
    %c1 = arith.constant 1 : index
    %c0_2 = arith.constant 0 : index
    %c0_3 = arith.constant 0 : index
    %2 = vector.load %arg3[%c1, %c0_2, %c0_3] : memref<4x8x128xf32, #tpu.memory_space<vmem>>, vector<1x8x128xf32>
    %3 = vector.shape_cast %2 : vector<1x8x128xf32> to vector<8x128xf32>
    %c2 = arith.constant 2 : index
    %c0_4 = arith.constant 0 : index
    %c0_5 = arith.constant 0 : index
    %4 = vector.load %arg3[%c2, %c0_4, %c0_5] : memref<4x8x128xf32, #tpu.memory_space<vmem>>, vector<1x8x128xf32>
    %5 = vector.shape_cast %4 : vector<1x8x128xf32> to vector<8x128xf32>
    %c3 = arith.constant 3 : index
    %c0_6 = arith.constant 0 : index
    %c0_7 = arith.constant 0 : index
    %6 = vector.load %arg3[%c3, %c0_6, %c0_7] : memref<4x8x128xf32, #tpu.memory_space<vmem>>, vector<1x8x128xf32>
    %7 = vector.shape_cast %6 : vector<1x8x128xf32> to vector<8x128xf32>
    %8 = arith.subf %5, %1 : vector<8x128xf32>
    %9 = arith.subf %7, %3 : vector<8x128xf32>
    %10 = arith.mulf %8, %9 : vector<8x128xf32>
    %11 = tpu.iota {dimensions = array<i32: 0>} : vector<8x128xi32>
    %c128_i32 = arith.constant 128 : i32
    %12 = vector.broadcast %c128_i32 : i32 to vector<8x128xi32>
    %13 = arith.muli %11, %12 : vector<8x128xi32>
    %14 = tpu.iota {dimensions = array<i32: 1>} : vector<8x128xi32>
    %15 = arith.addi %13, %14 : vector<8x128xi32>
    %cst = arith.constant -1.000000e+00 : f32
    %16 = vector.broadcast %cst : f32 to vector<8x128xf32>
    %c0_i32 = arith.constant 0 : i32
    %17 = vector.broadcast %c0_i32 : i32 to vector<8x128xi32>
    %cst_8 = arith.constant 0.000000e+00 : f32
    %18 = vector.broadcast %cst_8 : f32 to vector<8x128xf32>
    %cst_9 = arith.constant 0.000000e+00 : f32
    %19 = vector.broadcast %cst_9 : f32 to vector<8x128xf32>
    %cst_10 = arith.constant 0.000000e+00 : f32
    %20 = vector.broadcast %cst_10 : f32 to vector<8x128xf32>
    %cst_11 = arith.constant 0.000000e+00 : f32
    %21 = vector.broadcast %cst_11 : f32 to vector<8x128xf32>
    %c0_i32_12 = arith.constant 0 : i32
    %c0_i32_13 = arith.constant 0 : i32
    %c4_i32 = arith.constant 4 : i32
    %22 = arith.muli %c4_i32, %c0_i32_13 : i32
    %c0_i32_14 = arith.constant 0 : i32
    %23 = arith.addi %22, %c0_i32_14 : i32
    %24 = arith.index_cast %arg0 : i32 to index
    %25 = arith.index_cast %23 : i32 to index
    %26 = memref.load %arg1[%24, %25] : memref<2x24xf32, #tpu.memory_space<smem>>
    %c4_i32_15 = arith.constant 4 : i32
    %27 = arith.muli %c4_i32_15, %c0_i32_13 : i32
    %c1_i32 = arith.constant 1 : i32
    %28 = arith.addi %27, %c1_i32 : i32
    %29 = arith.index_cast %arg0 : i32 to index
    %30 = arith.index_cast %28 : i32 to index
    %31 = memref.load %arg1[%29, %30] : memref<2x24xf32, #tpu.memory_space<smem>>
    %c4_i32_16 = arith.constant 4 : i32
    %32 = arith.muli %c4_i32_16, %c0_i32_13 : i32
    %c2_i32 = arith.constant 2 : i32
    %33 = arith.addi %32, %c2_i32 : i32
    %34 = arith.index_cast %arg0 : i32 to index
    %35 = arith.index_cast %33 : i32 to index
    %36 = memref.load %arg1[%34, %35] : memref<2x24xf32, #tpu.memory_space<smem>>
    %c4_i32_17 = arith.constant 4 : i32
    %37 = arith.muli %c4_i32_17, %c0_i32_13 : i32
    %c3_i32 = arith.constant 3 : i32
    %38 = arith.addi %37, %c3_i32 : i32
    %39 = arith.index_cast %arg0 : i32 to index
    %40 = arith.index_cast %38 : i32 to index
    %41 = memref.load %arg1[%39, %40] : memref<2x24xf32, #tpu.memory_space<smem>>
    %42 = arith.index_cast %arg0 : i32 to index
    %43 = arith.index_cast %c0_i32_13 : i32 to index
    %44 = memref.load %arg2[%42, %43] : memref<2x6xi32, #tpu.memory_space<smem>>
    %45 = vector.broadcast %36 : f32 to vector<8x128xf32>
    %46 = arith.minimumf %5, %45 : vector<8x128xf32>
    %47 = vector.broadcast %26 : f32 to vector<8x128xf32>
    %48 = arith.maximumf %1, %47 : vector<8x128xf32>
    %49 = arith.subf %46, %48 : vector<8x128xf32>
    %cst_18 = arith.constant 0.000000e+00 : f32
    %50 = vector.broadcast %cst_18 : f32 to vector<8x128xf32>
    %51 = arith.maximumf %49, %50 : vector<8x128xf32>
    %52 = vector.broadcast %41 : f32 to vector<8x128xf32>
    %53 = arith.minimumf %7, %52 : vector<8x128xf32>
    %54 = vector.broadcast %31 : f32 to vector<8x128xf32>
    %55 = arith.maximumf %3, %54 : vector<8x128xf32>
    %56 = arith.subf %53, %55 : vector<8x128xf32>
    %cst_19 = arith.constant 0.000000e+00 : f32
    %57 = vector.broadcast %cst_19 : f32 to vector<8x128xf32>
    %58 = arith.maximumf %56, %57 : vector<8x128xf32>
    %59 = arith.mulf %51, %58 : vector<8x128xf32>
    %60 = arith.subf %36, %26 : f32
    %61 = arith.subf %41, %31 : f32
    %62 = arith.mulf %60, %61 : f32
    %63 = vector.broadcast %62 : f32 to vector<8x128xf32>
    %64 = arith.addf %63, %10 : vector<8x128xf32>
    %65 = arith.subf %64, %59 : vector<8x128xf32>
    %66 = arith.divf %59, %65 : vector<8x128xf32>
    %67 = arith.cmpf ogt, %66, %16 : vector<8x128xf32>
    %68 = arith.select %67, %66, %16 : vector<8x128xi1>, vector<8x128xf32>
    %69 = vector.broadcast %44 : i32 to vector<8x128xi32>
    %70 = arith.select %67, %69, %17 : vector<8x128xi1>, vector<8x128xi32>
    %71 = vector.broadcast %26 : f32 to vector<8x128xf32>
    %72 = arith.select %67, %71, %18 : vector<8x128xi1>, vector<8x128xf32>
    %73 = vector.broadcast %31 : f32 to vector<8x128xf32>
    %74 = arith.select %67, %73, %19 : vector<8x128xi1>, vector<8x128xf32>
    %75 = vector.broadcast %36 : f32 to vector<8x128xf32>
    %76 = arith.select %67, %75, %20 : vector<8x128xi1>, vector<8x128xf32>
    %77 = vector.broadcast %41 : f32 to vector<8x128xf32>
    %78 = arith.select %67, %77, %21 : vector<8x128xi1>, vector<8x128xf32>
    %79 = vector.shape_cast %66 : vector<8x128xf32> to vector<1x8x128xf32>
    %cst_20 = arith.constant dense<0xFF800000> : vector<1xf32>
    %80 = vector.multi_reduction <maximumf>, %79, %cst_20 [1, 2] : vector<1x8x128xf32> to vector<1xf32>
    %81 = vector.shape_cast %80 : vector<1xf32> to vector<1x1x1xf32>
    %82 = vector.extract %81[0, 0, 0] : f32 from vector<1x1x1xf32>
    %83 = vector.broadcast %82 : f32 to vector<8x128xf32>
    %84 = arith.cmpf oeq, %66, %83 : vector<8x128xf32>
    %c1024_i32 = arith.constant 1024 : i32
    %85 = vector.broadcast %c1024_i32 : i32 to vector<8x128xi32>
    %86 = arith.select %84, %15, %85 : vector<8x128xi1>, vector<8x128xi32>
    %87 = vector.shape_cast %86 : vector<8x128xi32> to vector<1x8x128xi32>
    %cst_21 = arith.constant dense<2147483647> : vector<1xi32>
    %88 = vector.multi_reduction <minsi>, %87, %cst_21 [1, 2] : vector<1x8x128xi32> to vector<1xi32>
    %89 = vector.shape_cast %88 : vector<1xi32> to vector<1x1x1xi32>
    %90 = vector.extract %89[0, 0, 0] : i32 from vector<1x1x1xi32>
    %cst_22 = arith.constant 0.000000e+00 : f32
    %91 = arith.cmpf ogt, %82, %cst_22 : f32
    %92 = vector.broadcast %90 : i32 to vector<8x128xi32>
    %93 = arith.cmpi eq, %15, %92 : vector<8x128xi32>
    %94 = vector.broadcast %91 : i1 to vector<8x128xi1>
    %95 = arith.andi %93, %94 : vector<8x128xi1>
    %cst_23 = arith.constant 1.000000e+00 : f32
    %96 = vector.broadcast %cst_23 : f32 to vector<8x128xf32>
    %97 = arith.select %95, %96, %68 : vector<8x128xi1>, vector<8x128xf32>
    %98 = arith.index_cast %arg0 : i32 to index
    %99 = arith.index_cast %c0_i32_12 : i32 to index
    %100 = memref.load %arg2[%98, %99] : memref<2x6xi32, #tpu.memory_space<smem>>
    %101 = vector.broadcast %100 : i32 to vector<8x128xi32>
    %102 = arith.select %95, %101, %70 : vector<8x128xi1>, vector<8x128xi32>
    %c4_i32_24 = arith.constant 4 : i32
    %103 = arith.muli %c4_i32_24, %c0_i32_12 : i32
    %c0_i32_25 = arith.constant 0 : i32
    %104 = arith.addi %103, %c0_i32_25 : i32
    %105 = arith.index_cast %arg0 : i32 to index
    %106 = arith.index_cast %104 : i32 to index
    %107 = memref.load %arg1[%105, %106] : memref<2x24xf32, #tpu.memory_space<smem>>
    %108 = vector.broadcast %107 : f32 to vector<8x128xf32>
    %109 = arith.select %95, %108, %72 : vector<8x128xi1>, vector<8x128xf32>
    %c4_i32_26 = arith.constant 4 : i32
    %110 = arith.muli %c4_i32_26, %c0_i32_12 : i32
    %c1_i32_27 = arith.constant 1 : i32
    %111 = arith.addi %110, %c1_i32_27 : i32
    %112 = arith.index_cast %arg0 : i32 to index
    %113 = arith.index_cast %111 : i32 to index
    %114 = memref.load %arg1[%112, %113] : memref<2x24xf32, #tpu.memory_space<smem>>
    %115 = vector.broadcast %114 : f32 to vector<8x128xf32>
    %116 = arith.select %95, %115, %74 : vector<8x128xi1>, vector<8x128xf32>
    %c4_i32_28 = arith.constant 4 : i32
    %117 = arith.muli %c4_i32_28, %c0_i32_12 : i32
    %c2_i32_29 = arith.constant 2 : i32
    %118 = arith.addi %117, %c2_i32_29 : i32
    %119 = arith.index_cast %arg0 : i32 to index
    %120 = arith.index_cast %118 : i32 to index
    %121 = memref.load %arg1[%119, %120] : memref<2x24xf32, #tpu.memory_space<smem>>
    %122 = vector.broadcast %121 : f32 to vector<8x128xf32>
    %123 = arith.select %95, %122, %76 : vector<8x128xi1>, vector<8x128xf32>
    %c4_i32_30 = arith.constant 4 : i32
    %124 = arith.muli %c4_i32_30, %c0_i32_12 : i32
    %c3_i32_31 = arith.constant 3 : i32
    %125 = arith.addi %124, %c3_i32_31 : i32
    %126 = arith.index_cast %arg0 : i32 to index
    %127 = arith.index_cast %125 : i32 to index
    %128 = memref.load %arg1[%126, %127] : memref<2x24xf32, #tpu.memory_space<smem>>
    %129 = vector.broadcast %128 : f32 to vector<8x128xf32>
    %130 = arith.select %95, %129, %78 : vector<8x128xi1>, vector<8x128xf32>
    %131 = arith.extui %91 : i1 to i32
    %132 = arith.addi %c0_i32_12, %131 : i32
    %c1_i32_32 = arith.constant 1 : i32
    %c4_i32_33 = arith.constant 4 : i32
    %133 = arith.muli %c4_i32_33, %c1_i32_32 : i32
    %c0_i32_34 = arith.constant 0 : i32
    %134 = arith.addi %133, %c0_i32_34 : i32
    %135 = arith.index_cast %arg0 : i32 to index
    %136 = arith.index_cast %134 : i32 to index
    %137 = memref.load %arg1[%135, %136] : memref<2x24xf32, #tpu.memory_space<smem>>
    %c4_i32_35 = arith.constant 4 : i32
    %138 = arith.muli %c4_i32_35, %c1_i32_32 : i32
    %c1_i32_36 = arith.constant 1 : i32
    %139 = arith.addi %138, %c1_i32_36 : i32
    %140 = arith.index_cast %arg0 : i32 to index
    %141 = arith.index_cast %139 : i32 to index
    %142 = memref.load %arg1[%140, %141] : memref<2x24xf32, #tpu.memory_space<smem>>
    %c4_i32_37 = arith.constant 4 : i32
    %143 = arith.muli %c4_i32_37, %c1_i32_32 : i32
    %c2_i32_38 = arith.constant 2 : i32
    %144 = arith.addi %143, %c2_i32_38 : i32
    %145 = arith.index_cast %arg0 : i32 to index
    %146 = arith.index_cast %144 : i32 to index
    %147 = memref.load %arg1[%145, %146] : memref<2x24xf32, #tpu.memory_space<smem>>
    %c4_i32_39 = arith.constant 4 : i32
    %148 = arith.muli %c4_i32_39, %c1_i32_32 : i32
    %c3_i32_40 = arith.constant 3 : i32
    %149 = arith.addi %148, %c3_i32_40 : i32
    %150 = arith.index_cast %arg0 : i32 to index
    %151 = arith.index_cast %149 : i32 to index
    %152 = memref.load %arg1[%150, %151] : memref<2x24xf32, #tpu.memory_space<smem>>
    %153 = arith.index_cast %arg0 : i32 to index
    %154 = arith.index_cast %c1_i32_32 : i32 to index
    %155 = memref.load %arg2[%153, %154] : memref<2x6xi32, #tpu.memory_space<smem>>
    %156 = vector.broadcast %147 : f32 to vector<8x128xf32>
    %157 = arith.minimumf %5, %156 : vector<8x128xf32>
    %158 = vector.broadcast %137 : f32 to vector<8x128xf32>
    %159 = arith.maximumf %1, %158 : vector<8x128xf32>
    %160 = arith.subf %157, %159 : vector<8x128xf32>
    %cst_41 = arith.constant 0.000000e+00 : f32
    %161 = vector.broadcast %cst_41 : f32 to vector<8x128xf32>
    %162 = arith.maximumf %160, %161 : vector<8x128xf32>
    %163 = vector.broadcast %152 : f32 to vector<8x128xf32>
    %164 = arith.minimumf %7, %163 : vector<8x128xf32>
    %165 = vector.broadcast %142 : f32 to vector<8x128xf32>
    %166 = arith.maximumf %3, %165 : vector<8x128xf32>
    %167 = arith.subf %164, %166 : vector<8x128xf32>
    %cst_42 = arith.constant 0.000000e+00 : f32
    %168 = vector.broadcast %cst_42 : f32 to vector<8x128xf32>
    %169 = arith.maximumf %167, %168 : vector<8x128xf32>
    %170 = arith.mulf %162, %169 : vector<8x128xf32>
    %171 = arith.subf %147, %137 : f32
    %172 = arith.subf %152, %142 : f32
    %173 = arith.mulf %171, %172 : f32
    %174 = vector.broadcast %173 : f32 to vector<8x128xf32>
    %175 = arith.addf %174, %10 : vector<8x128xf32>
    %176 = arith.subf %175, %170 : vector<8x128xf32>
    %177 = arith.divf %170, %176 : vector<8x128xf32>
    %178 = arith.cmpf ogt, %177, %97 : vector<8x128xf32>
    %179 = arith.select %178, %177, %97 : vector<8x128xi1>, vector<8x128xf32>
    %180 = vector.broadcast %155 : i32 to vector<8x128xi32>
    %181 = arith.select %178, %180, %102 : vector<8x128xi1>, vector<8x128xi32>
    %182 = vector.broadcast %137 : f32 to vector<8x128xf32>
    %183 = arith.select %178, %182, %109 : vector<8x128xi1>, vector<8x128xf32>
    %184 = vector.broadcast %142 : f32 to vector<8x128xf32>
    %185 = arith.select %178, %184, %116 : vector<8x128xi1>, vector<8x128xf32>
    %186 = vector.broadcast %147 : f32 to vector<8x128xf32>
    %187 = arith.select %178, %186, %123 : vector<8x128xi1>, vector<8x128xf32>
    %188 = vector.broadcast %152 : f32 to vector<8x128xf32>
    %189 = arith.select %178, %188, %130 : vector<8x128xi1>, vector<8x128xf32>
    %190 = vector.shape_cast %177 : vector<8x128xf32> to vector<1x8x128xf32>
    %cst_43 = arith.constant dense<0xFF800000> : vector<1xf32>
    %191 = vector.multi_reduction <maximumf>, %190, %cst_43 [1, 2] : vector<1x8x128xf32> to vector<1xf32>
    %192 = vector.shape_cast %191 : vector<1xf32> to vector<1x1x1xf32>
    %193 = vector.extract %192[0, 0, 0] : f32 from vector<1x1x1xf32>
    %194 = vector.broadcast %193 : f32 to vector<8x128xf32>
    %195 = arith.cmpf oeq, %177, %194 : vector<8x128xf32>
    %c1024_i32_44 = arith.constant 1024 : i32
    %196 = vector.broadcast %c1024_i32_44 : i32 to vector<8x128xi32>
    %197 = arith.select %195, %15, %196 : vector<8x128xi1>, vector<8x128xi32>
    %198 = vector.shape_cast %197 : vector<8x128xi32> to vector<1x8x128xi32>
    %cst_45 = arith.constant dense<2147483647> : vector<1xi32>
    %199 = vector.multi_reduction <minsi>, %198, %cst_45 [1, 2] : vector<1x8x128xi32> to vector<1xi32>
    %200 = vector.shape_cast %199 : vector<1xi32> to vector<1x1x1xi32>
    %201 = vector.extract %200[0, 0, 0] : i32 from vector<1x1x1xi32>
    %cst_46 = arith.constant 0.000000e+00 : f32
    %202 = arith.cmpf ogt, %193, %cst_46 : f32
    %203 = vector.broadcast %201 : i32 to vector<8x128xi32>
    %204 = arith.cmpi eq, %15, %203 : vector<8x128xi32>
    %205 = vector.broadcast %202 : i1 to vector<8x128xi1>
    %206 = arith.andi %204, %205 : vector<8x128xi1>
    %cst_47 = arith.constant 1.000000e+00 : f32
    %207 = vector.broadcast %cst_47 : f32 to vector<8x128xf32>
    %208 = arith.select %206, %207, %179 : vector<8x128xi1>, vector<8x128xf32>
    %209 = arith.index_cast %arg0 : i32 to index
    %210 = arith.index_cast %132 : i32 to index
    %211 = memref.load %arg2[%209, %210] : memref<2x6xi32, #tpu.memory_space<smem>>
    %212 = vector.broadcast %211 : i32 to vector<8x128xi32>
    %213 = arith.select %206, %212, %181 : vector<8x128xi1>, vector<8x128xi32>
    %c4_i32_48 = arith.constant 4 : i32
    %214 = arith.muli %c4_i32_48, %132 : i32
    %c0_i32_49 = arith.constant 0 : i32
    %215 = arith.addi %214, %c0_i32_49 : i32
    %216 = arith.index_cast %arg0 : i32 to index
    %217 = arith.index_cast %215 : i32 to index
    %218 = memref.load %arg1[%216, %217] : memref<2x24xf32, #tpu.memory_space<smem>>
    %219 = vector.broadcast %218 : f32 to vector<8x128xf32>
    %220 = arith.select %206, %219, %183 : vector<8x128xi1>, vector<8x128xf32>
    %c4_i32_50 = arith.constant 4 : i32
    %221 = arith.muli %c4_i32_50, %132 : i32
    %c1_i32_51 = arith.constant 1 : i32
    %222 = arith.addi %221, %c1_i32_51 : i32
    %223 = arith.index_cast %arg0 : i32 to index
    %224 = arith.index_cast %222 : i32 to index
    %225 = memref.load %arg1[%223, %224] : memref<2x24xf32, #tpu.memory_space<smem>>
    %226 = vector.broadcast %225 : f32 to vector<8x128xf32>
    %227 = arith.select %206, %226, %185 : vector<8x128xi1>, vector<8x128xf32>
    %c4_i32_52 = arith.constant 4 : i32
    %228 = arith.muli %c4_i32_52, %132 : i32
    %c2_i32_53 = arith.constant 2 : i32
    %229 = arith.addi %228, %c2_i32_53 : i32
    %230 = arith.index_cast %arg0 : i32 to index
    %231 = arith.index_cast %229 : i32 to index
    %232 = memref.load %arg1[%230, %231] : memref<2x24xf32, #tpu.memory_space<smem>>
    %233 = vector.broadcast %232 : f32 to vector<8x128xf32>
    %234 = arith.select %206, %233, %187 : vector<8x128xi1>, vector<8x128xf32>
    %c4_i32_54 = arith.constant 4 : i32
    %235 = arith.muli %c4_i32_54, %132 : i32
    %c3_i32_55 = arith.constant 3 : i32
    %236 = arith.addi %235, %c3_i32_55 : i32
    %237 = arith.index_cast %arg0 : i32 to index
    %238 = arith.index_cast %236 : i32 to index
    %239 = memref.load %arg1[%237, %238] : memref<2x24xf32, #tpu.memory_space<smem>>
    %240 = vector.broadcast %239 : f32 to vector<8x128xf32>
    %241 = arith.select %206, %240, %189 : vector<8x128xi1>, vector<8x128xf32>
    %242 = arith.extui %202 : i1 to i32
    %243 = arith.addi %132, %242 : i32
    %c2_i32_56 = arith.constant 2 : i32
    %c4_i32_57 = arith.constant 4 : i32
    %244 = arith.muli %c4_i32_57, %c2_i32_56 : i32
    %c0_i32_58 = arith.constant 0 : i32
    %245 = arith.addi %244, %c0_i32_58 : i32
    %246 = arith.index_cast %arg0 : i32 to index
    %247 = arith.index_cast %245 : i32 to index
    %248 = memref.load %arg1[%246, %247] : memref<2x24xf32, #tpu.memory_space<smem>>
    %c4_i32_59 = arith.constant 4 : i32
    %249 = arith.muli %c4_i32_59, %c2_i32_56 : i32
    %c1_i32_60 = arith.constant 1 : i32
    %250 = arith.addi %249, %c1_i32_60 : i32
    %251 = arith.index_cast %arg0 : i32 to index
    %252 = arith.index_cast %250 : i32 to index
    %253 = memref.load %arg1[%251, %252] : memref<2x24xf32, #tpu.memory_space<smem>>
    %c4_i32_61 = arith.constant 4 : i32
    %254 = arith.muli %c4_i32_61, %c2_i32_56 : i32
    %c2_i32_62 = arith.constant 2 : i32
    %255 = arith.addi %254, %c2_i32_62 : i32
    %256 = arith.index_cast %arg0 : i32 to index
    %257 = arith.index_cast %255 : i32 to index
    %258 = memref.load %arg1[%256, %257] : memref<2x24xf32, #tpu.memory_space<smem>>
    %c4_i32_63 = arith.constant 4 : i32
    %259 = arith.muli %c4_i32_63, %c2_i32_56 : i32
    %c3_i32_64 = arith.constant 3 : i32
    %260 = arith.addi %259, %c3_i32_64 : i32
    %261 = arith.index_cast %arg0 : i32 to index
    %262 = arith.index_cast %260 : i32 to index
    %263 = memref.load %arg1[%261, %262] : memref<2x24xf32, #tpu.memory_space<smem>>
    %264 = arith.index_cast %arg0 : i32 to index
    %265 = arith.index_cast %c2_i32_56 : i32 to index
    %266 = memref.load %arg2[%264, %265] : memref<2x6xi32, #tpu.memory_space<smem>>
    %267 = vector.broadcast %258 : f32 to vector<8x128xf32>
    %268 = arith.minimumf %5, %267 : vector<8x128xf32>
    %269 = vector.broadcast %248 : f32 to vector<8x128xf32>
    %270 = arith.maximumf %1, %269 : vector<8x128xf32>
    %271 = arith.subf %268, %270 : vector<8x128xf32>
    %cst_65 = arith.constant 0.000000e+00 : f32
    %272 = vector.broadcast %cst_65 : f32 to vector<8x128xf32>
    %273 = arith.maximumf %271, %272 : vector<8x128xf32>
    %274 = vector.broadcast %263 : f32 to vector<8x128xf32>
    %275 = arith.minimumf %7, %274 : vector<8x128xf32>
    %276 = vector.broadcast %253 : f32 to vector<8x128xf32>
    %277 = arith.maximumf %3, %276 : vector<8x128xf32>
    %278 = arith.subf %275, %277 : vector<8x128xf32>
    %cst_66 = arith.constant 0.000000e+00 : f32
    %279 = vector.broadcast %cst_66 : f32 to vector<8x128xf32>
    %280 = arith.maximumf %278, %279 : vector<8x128xf32>
    %281 = arith.mulf %273, %280 : vector<8x128xf32>
    %282 = arith.subf %258, %248 : f32
    %283 = arith.subf %263, %253 : f32
    %284 = arith.mulf %282, %283 : f32
    %285 = vector.broadcast %284 : f32 to vector<8x128xf32>
    %286 = arith.addf %285, %10 : vector<8x128xf32>
    %287 = arith.subf %286, %281 : vector<8x128xf32>
    %288 = arith.divf %281, %287 : vector<8x128xf32>
    %289 = arith.cmpf ogt, %288, %208 : vector<8x128xf32>
    %290 = arith.select %289, %288, %208 : vector<8x128xi1>, vector<8x128xf32>
    %291 = vector.broadcast %266 : i32 to vector<8x128xi32>
    %292 = arith.select %289, %291, %213 : vector<8x128xi1>, vector<8x128xi32>
    %293 = vector.broadcast %248 : f32 to vector<8x128xf32>
    %294 = arith.select %289, %293, %220 : vector<8x128xi1>, vector<8x128xf32>
    %295 = vector.broadcast %253 : f32 to vector<8x128xf32>
    %296 = arith.select %289, %295, %227 : vector<8x128xi1>, vector<8x128xf32>
    %297 = vector.broadcast %258 : f32 to vector<8x128xf32>
    %298 = arith.select %289, %297, %234 : vector<8x128xi1>, vector<8x128xf32>
    %299 = vector.broadcast %263 : f32 to vector<8x128xf32>
    %300 = arith.select %289, %299, %241 : vector<8x128xi1>, vector<8x128xf32>
    %301 = vector.shape_cast %288 : vector<8x128xf32> to vector<1x8x128xf32>
    %cst_67 = arith.constant dense<0xFF800000> : vector<1xf32>
    %302 = vector.multi_reduction <maximumf>, %301, %cst_67 [1, 2] : vector<1x8x128xf32> to vector<1xf32>
    %303 = vector.shape_cast %302 : vector<1xf32> to vector<1x1x1xf32>
    %304 = vector.extract %303[0, 0, 0] : f32 from vector<1x1x1xf32>
    %305 = vector.broadcast %304 : f32 to vector<8x128xf32>
    %306 = arith.cmpf oeq, %288, %305 : vector<8x128xf32>
    %c1024_i32_68 = arith.constant 1024 : i32
    %307 = vector.broadcast %c1024_i32_68 : i32 to vector<8x128xi32>
    %308 = arith.select %306, %15, %307 : vector<8x128xi1>, vector<8x128xi32>
    %309 = vector.shape_cast %308 : vector<8x128xi32> to vector<1x8x128xi32>
    %cst_69 = arith.constant dense<2147483647> : vector<1xi32>
    %310 = vector.multi_reduction <minsi>, %309, %cst_69 [1, 2] : vector<1x8x128xi32> to vector<1xi32>
    %311 = vector.shape_cast %310 : vector<1xi32> to vector<1x1x1xi32>
    %312 = vector.extract %311[0, 0, 0] : i32 from vector<1x1x1xi32>
    %cst_70 = arith.constant 0.000000e+00 : f32
    %313 = arith.cmpf ogt, %304, %cst_70 : f32
    %314 = vector.broadcast %312 : i32 to vector<8x128xi32>
    %315 = arith.cmpi eq, %15, %314 : vector<8x128xi32>
    %316 = vector.broadcast %313 : i1 to vector<8x128xi1>
    %317 = arith.andi %315, %316 : vector<8x128xi1>
    %cst_71 = arith.constant 1.000000e+00 : f32
    %318 = vector.broadcast %cst_71 : f32 to vector<8x128xf32>
    %319 = arith.select %317, %318, %290 : vector<8x128xi1>, vector<8x128xf32>
    %320 = arith.index_cast %arg0 : i32 to index
    %321 = arith.index_cast %243 : i32 to index
    %322 = memref.load %arg2[%320, %321] : memref<2x6xi32, #tpu.memory_space<smem>>
    %323 = vector.broadcast %322 : i32 to vector<8x128xi32>
    %324 = arith.select %317, %323, %292 : vector<8x128xi1>, vector<8x128xi32>
    %c4_i32_72 = arith.constant 4 : i32
    %325 = arith.muli %c4_i32_72, %243 : i32
    %c0_i32_73 = arith.constant 0 : i32
    %326 = arith.addi %325, %c0_i32_73 : i32
    %327 = arith.index_cast %arg0 : i32 to index
    %328 = arith.index_cast %326 : i32 to index
    %329 = memref.load %arg1[%327, %328] : memref<2x24xf32, #tpu.memory_space<smem>>
    %330 = vector.broadcast %329 : f32 to vector<8x128xf32>
    %331 = arith.select %317, %330, %294 : vector<8x128xi1>, vector<8x128xf32>
    %c4_i32_74 = arith.constant 4 : i32
    %332 = arith.muli %c4_i32_74, %243 : i32
    %c1_i32_75 = arith.constant 1 : i32
    %333 = arith.addi %332, %c1_i32_75 : i32
    %334 = arith.index_cast %arg0 : i32 to index
    %335 = arith.index_cast %333 : i32 to index
    %336 = memref.load %arg1[%334, %335] : memref<2x24xf32, #tpu.memory_space<smem>>
    %337 = vector.broadcast %336 : f32 to vector<8x128xf32>
    %338 = arith.select %317, %337, %296 : vector<8x128xi1>, vector<8x128xf32>
    %c4_i32_76 = arith.constant 4 : i32
    %339 = arith.muli %c4_i32_76, %243 : i32
    %c2_i32_77 = arith.constant 2 : i32
    %340 = arith.addi %339, %c2_i32_77 : i32
    %341 = arith.index_cast %arg0 : i32 to index
    %342 = arith.index_cast %340 : i32 to index
    %343 = memref.load %arg1[%341, %342] : memref<2x24xf32, #tpu.memory_space<smem>>
    %344 = vector.broadcast %343 : f32 to vector<8x128xf32>
    %345 = arith.select %317, %344, %298 : vector<8x128xi1>, vector<8x128xf32>
    %c4_i32_78 = arith.constant 4 : i32
    %346 = arith.muli %c4_i32_78, %243 : i32
    %c3_i32_79 = arith.constant 3 : i32
    %347 = arith.addi %346, %c3_i32_79 : i32
    %348 = arith.index_cast %arg0 : i32 to index
    %349 = arith.index_cast %347 : i32 to index
    %350 = memref.load %arg1[%348, %349] : memref<2x24xf32, #tpu.memory_space<smem>>
    %351 = vector.broadcast %350 : f32 to vector<8x128xf32>
    %352 = arith.select %317, %351, %300 : vector<8x128xi1>, vector<8x128xf32>
    %353 = arith.extui %313 : i1 to i32
    %354 = arith.addi %243, %353 : i32
    %c3_i32_80 = arith.constant 3 : i32
    %c4_i32_81 = arith.constant 4 : i32
    %355 = arith.muli %c4_i32_81, %c3_i32_80 : i32
    %c0_i32_82 = arith.constant 0 : i32
    %356 = arith.addi %355, %c0_i32_82 : i32
    %357 = arith.index_cast %arg0 : i32 to index
    %358 = arith.index_cast %356 : i32 to index
    %359 = memref.load %arg1[%357, %358] : memref<2x24xf32, #tpu.memory_space<smem>>
    %c4_i32_83 = arith.constant 4 : i32
    %360 = arith.muli %c4_i32_83, %c3_i32_80 : i32
    %c1_i32_84 = arith.constant 1 : i32
    %361 = arith.addi %360, %c1_i32_84 : i32
    %362 = arith.index_cast %arg0 : i32 to index
    %363 = arith.index_cast %361 : i32 to index
    %364 = memref.load %arg1[%362, %363] : memref<2x24xf32, #tpu.memory_space<smem>>
    %c4_i32_85 = arith.constant 4 : i32
    %365 = arith.muli %c4_i32_85, %c3_i32_80 : i32
    %c2_i32_86 = arith.constant 2 : i32
    %366 = arith.addi %365, %c2_i32_86 : i32
    %367 = arith.index_cast %arg0 : i32 to index
    %368 = arith.index_cast %366 : i32 to index
    %369 = memref.load %arg1[%367, %368] : memref<2x24xf32, #tpu.memory_space<smem>>
    %c4_i32_87 = arith.constant 4 : i32
    %370 = arith.muli %c4_i32_87, %c3_i32_80 : i32
    %c3_i32_88 = arith.constant 3 : i32
    %371 = arith.addi %370, %c3_i32_88 : i32
    %372 = arith.index_cast %arg0 : i32 to index
    %373 = arith.index_cast %371 : i32 to index
    %374 = memref.load %arg1[%372, %373] : memref<2x24xf32, #tpu.memory_space<smem>>
    %375 = arith.index_cast %arg0 : i32 to index
    %376 = arith.index_cast %c3_i32_80 : i32 to index
    %377 = memref.load %arg2[%375, %376] : memref<2x6xi32, #tpu.memory_space<smem>>
    %378 = vector.broadcast %369 : f32 to vector<8x128xf32>
    %379 = arith.minimumf %5, %378 : vector<8x128xf32>
    %380 = vector.broadcast %359 : f32 to vector<8x128xf32>
    %381 = arith.maximumf %1, %380 : vector<8x128xf32>
    %382 = arith.subf %379, %381 : vector<8x128xf32>
    %cst_89 = arith.constant 0.000000e+00 : f32
    %383 = vector.broadcast %cst_89 : f32 to vector<8x128xf32>
    %384 = arith.maximumf %382, %383 : vector<8x128xf32>
    %385 = vector.broadcast %374 : f32 to vector<8x128xf32>
    %386 = arith.minimumf %7, %385 : vector<8x128xf32>
    %387 = vector.broadcast %364 : f32 to vector<8x128xf32>
    %388 = arith.maximumf %3, %387 : vector<8x128xf32>
    %389 = arith.subf %386, %388 : vector<8x128xf32>
    %cst_90 = arith.constant 0.000000e+00 : f32
    %390 = vector.broadcast %cst_90 : f32 to vector<8x128xf32>
    %391 = arith.maximumf %389, %390 : vector<8x128xf32>
    %392 = arith.mulf %384, %391 : vector<8x128xf32>
    %393 = arith.subf %369, %359 : f32
    %394 = arith.subf %374, %364 : f32
    %395 = arith.mulf %393, %394 : f32
    %396 = vector.broadcast %395 : f32 to vector<8x128xf32>
    %397 = arith.addf %396, %10 : vector<8x128xf32>
    %398 = arith.subf %397, %392 : vector<8x128xf32>
    %399 = arith.divf %392, %398 : vector<8x128xf32>
    %400 = arith.cmpf ogt, %399, %319 : vector<8x128xf32>
    %401 = arith.select %400, %399, %319 : vector<8x128xi1>, vector<8x128xf32>
    %402 = vector.broadcast %377 : i32 to vector<8x128xi32>
    %403 = arith.select %400, %402, %324 : vector<8x128xi1>, vector<8x128xi32>
    %404 = vector.broadcast %359 : f32 to vector<8x128xf32>
    %405 = arith.select %400, %404, %331 : vector<8x128xi1>, vector<8x128xf32>
    %406 = vector.broadcast %364 : f32 to vector<8x128xf32>
    %407 = arith.select %400, %406, %338 : vector<8x128xi1>, vector<8x128xf32>
    %408 = vector.broadcast %369 : f32 to vector<8x128xf32>
    %409 = arith.select %400, %408, %345 : vector<8x128xi1>, vector<8x128xf32>
    %410 = vector.broadcast %374 : f32 to vector<8x128xf32>
    %411 = arith.select %400, %410, %352 : vector<8x128xi1>, vector<8x128xf32>
    %412 = vector.shape_cast %399 : vector<8x128xf32> to vector<1x8x128xf32>
    %cst_91 = arith.constant dense<0xFF800000> : vector<1xf32>
    %413 = vector.multi_reduction <maximumf>, %412, %cst_91 [1, 2] : vector<1x8x128xf32> to vector<1xf32>
    %414 = vector.shape_cast %413 : vector<1xf32> to vector<1x1x1xf32>
    %415 = vector.extract %414[0, 0, 0] : f32 from vector<1x1x1xf32>
    %416 = vector.broadcast %415 : f32 to vector<8x128xf32>
    %417 = arith.cmpf oeq, %399, %416 : vector<8x128xf32>
    %c1024_i32_92 = arith.constant 1024 : i32
    %418 = vector.broadcast %c1024_i32_92 : i32 to vector<8x128xi32>
    %419 = arith.select %417, %15, %418 : vector<8x128xi1>, vector<8x128xi32>
    %420 = vector.shape_cast %419 : vector<8x128xi32> to vector<1x8x128xi32>
    %cst_93 = arith.constant dense<2147483647> : vector<1xi32>
    %421 = vector.multi_reduction <minsi>, %420, %cst_93 [1, 2] : vector<1x8x128xi32> to vector<1xi32>
    %422 = vector.shape_cast %421 : vector<1xi32> to vector<1x1x1xi32>
    %423 = vector.extract %422[0, 0, 0] : i32 from vector<1x1x1xi32>
    %cst_94 = arith.constant 0.000000e+00 : f32
    %424 = arith.cmpf ogt, %415, %cst_94 : f32
    %425 = vector.broadcast %423 : i32 to vector<8x128xi32>
    %426 = arith.cmpi eq, %15, %425 : vector<8x128xi32>
    %427 = vector.broadcast %424 : i1 to vector<8x128xi1>
    %428 = arith.andi %426, %427 : vector<8x128xi1>
    %cst_95 = arith.constant 1.000000e+00 : f32
    %429 = vector.broadcast %cst_95 : f32 to vector<8x128xf32>
    %430 = arith.select %428, %429, %401 : vector<8x128xi1>, vector<8x128xf32>
    %431 = arith.index_cast %arg0 : i32 to index
    %432 = arith.index_cast %354 : i32 to index
    %433 = memref.load %arg2[%431, %432] : memref<2x6xi32, #tpu.memory_space<smem>>
    %434 = vector.broadcast %433 : i32 to vector<8x128xi32>
    %435 = arith.select %428, %434, %403 : vector<8x128xi1>, vector<8x128xi32>
    %c4_i32_96 = arith.constant 4 : i32
    %436 = arith.muli %c4_i32_96, %354 : i32
    %c0_i32_97 = arith.constant 0 : i32
    %437 = arith.addi %436, %c0_i32_97 : i32
    %438 = arith.index_cast %arg0 : i32 to index
    %439 = arith.index_cast %437 : i32 to index
    %440 = memref.load %arg1[%438, %439] : memref<2x24xf32, #tpu.memory_space<smem>>
    %441 = vector.broadcast %440 : f32 to vector<8x128xf32>
    %442 = arith.select %428, %441, %405 : vector<8x128xi1>, vector<8x128xf32>
    %c4_i32_98 = arith.constant 4 : i32
    %443 = arith.muli %c4_i32_98, %354 : i32
    %c1_i32_99 = arith.constant 1 : i32
    %444 = arith.addi %443, %c1_i32_99 : i32
    %445 = arith.index_cast %arg0 : i32 to index
    %446 = arith.index_cast %444 : i32 to index
    %447 = memref.load %arg1[%445, %446] : memref<2x24xf32, #tpu.memory_space<smem>>
    %448 = vector.broadcast %447 : f32 to vector<8x128xf32>
    %449 = arith.select %428, %448, %407 : vector<8x128xi1>, vector<8x128xf32>
    %c4_i32_100 = arith.constant 4 : i32
    %450 = arith.muli %c4_i32_100, %354 : i32
    %c2_i32_101 = arith.constant 2 : i32
    %451 = arith.addi %450, %c2_i32_101 : i32
    %452 = arith.index_cast %arg0 : i32 to index
    %453 = arith.index_cast %451 : i32 to index
    %454 = memref.load %arg1[%452, %453] : memref<2x24xf32, #tpu.memory_space<smem>>
    %455 = vector.broadcast %454 : f32 to vector<8x128xf32>
    %456 = arith.select %428, %455, %409 : vector<8x128xi1>, vector<8x128xf32>
    %c4_i32_102 = arith.constant 4 : i32
    %457 = arith.muli %c4_i32_102, %354 : i32
    %c3_i32_103 = arith.constant 3 : i32
    %458 = arith.addi %457, %c3_i32_103 : i32
    %459 = arith.index_cast %arg0 : i32 to index
    %460 = arith.index_cast %458 : i32 to index
    %461 = memref.load %arg1[%459, %460] : memref<2x24xf32, #tpu.memory_space<smem>>
    %462 = vector.broadcast %461 : f32 to vector<8x128xf32>
    %463 = arith.select %428, %462, %411 : vector<8x128xi1>, vector<8x128xf32>
    %464 = arith.extui %424 : i1 to i32
    %465 = arith.addi %354, %464 : i32
    %c4_i32_104 = arith.constant 4 : i32
    %c4_i32_105 = arith.constant 4 : i32
    %466 = arith.muli %c4_i32_105, %c4_i32_104 : i32
    %c0_i32_106 = arith.constant 0 : i32
    %467 = arith.addi %466, %c0_i32_106 : i32
    %468 = arith.index_cast %arg0 : i32 to index
    %469 = arith.index_cast %467 : i32 to index
    %470 = memref.load %arg1[%468, %469] : memref<2x24xf32, #tpu.memory_space<smem>>
    %c4_i32_107 = arith.constant 4 : i32
    %471 = arith.muli %c4_i32_107, %c4_i32_104 : i32
    %c1_i32_108 = arith.constant 1 : i32
    %472 = arith.addi %471, %c1_i32_108 : i32
    %473 = arith.index_cast %arg0 : i32 to index
    %474 = arith.index_cast %472 : i32 to index
    %475 = memref.load %arg1[%473, %474] : memref<2x24xf32, #tpu.memory_space<smem>>
    %c4_i32_109 = arith.constant 4 : i32
    %476 = arith.muli %c4_i32_109, %c4_i32_104 : i32
    %c2_i32_110 = arith.constant 2 : i32
    %477 = arith.addi %476, %c2_i32_110 : i32
    %478 = arith.index_cast %arg0 : i32 to index
    %479 = arith.index_cast %477 : i32 to index
    %480 = memref.load %arg1[%478, %479] : memref<2x24xf32, #tpu.memory_space<smem>>
    %c4_i32_111 = arith.constant 4 : i32
    %481 = arith.muli %c4_i32_111, %c4_i32_104 : i32
    %c3_i32_112 = arith.constant 3 : i32
    %482 = arith.addi %481, %c3_i32_112 : i32
    %483 = arith.index_cast %arg0 : i32 to index
    %484 = arith.index_cast %482 : i32 to index
    %485 = memref.load %arg1[%483, %484] : memref<2x24xf32, #tpu.memory_space<smem>>
    %486 = arith.index_cast %arg0 : i32 to index
    %487 = arith.index_cast %c4_i32_104 : i32 to index
    %488 = memref.load %arg2[%486, %487] : memref<2x6xi32, #tpu.memory_space<smem>>
    %489 = vector.broadcast %480 : f32 to vector<8x128xf32>
    %490 = arith.minimumf %5, %489 : vector<8x128xf32>
    %491 = vector.broadcast %470 : f32 to vector<8x128xf32>
    %492 = arith.maximumf %1, %491 : vector<8x128xf32>
    %493 = arith.subf %490, %492 : vector<8x128xf32>
    %cst_113 = arith.constant 0.000000e+00 : f32
    %494 = vector.broadcast %cst_113 : f32 to vector<8x128xf32>
    %495 = arith.maximumf %493, %494 : vector<8x128xf32>
    %496 = vector.broadcast %485 : f32 to vector<8x128xf32>
    %497 = arith.minimumf %7, %496 : vector<8x128xf32>
    %498 = vector.broadcast %475 : f32 to vector<8x128xf32>
    %499 = arith.maximumf %3, %498 : vector<8x128xf32>
    %500 = arith.subf %497, %499 : vector<8x128xf32>
    %cst_114 = arith.constant 0.000000e+00 : f32
    %501 = vector.broadcast %cst_114 : f32 to vector<8x128xf32>
    %502 = arith.maximumf %500, %501 : vector<8x128xf32>
    %503 = arith.mulf %495, %502 : vector<8x128xf32>
    %504 = arith.subf %480, %470 : f32
    %505 = arith.subf %485, %475 : f32
    %506 = arith.mulf %504, %505 : f32
    %507 = vector.broadcast %506 : f32 to vector<8x128xf32>
    %508 = arith.addf %507, %10 : vector<8x128xf32>
    %509 = arith.subf %508, %503 : vector<8x128xf32>
    %510 = arith.divf %503, %509 : vector<8x128xf32>
    %511 = arith.cmpf ogt, %510, %430 : vector<8x128xf32>
    %512 = arith.select %511, %510, %430 : vector<8x128xi1>, vector<8x128xf32>
    %513 = vector.broadcast %488 : i32 to vector<8x128xi32>
    %514 = arith.select %511, %513, %435 : vector<8x128xi1>, vector<8x128xi32>
    %515 = vector.broadcast %470 : f32 to vector<8x128xf32>
    %516 = arith.select %511, %515, %442 : vector<8x128xi1>, vector<8x128xf32>
    %517 = vector.broadcast %475 : f32 to vector<8x128xf32>
    %518 = arith.select %511, %517, %449 : vector<8x128xi1>, vector<8x128xf32>
    %519 = vector.broadcast %480 : f32 to vector<8x128xf32>
    %520 = arith.select %511, %519, %456 : vector<8x128xi1>, vector<8x128xf32>
    %521 = vector.broadcast %485 : f32 to vector<8x128xf32>
    %522 = arith.select %511, %521, %463 : vector<8x128xi1>, vector<8x128xf32>
    %523 = vector.shape_cast %510 : vector<8x128xf32> to vector<1x8x128xf32>
    %cst_115 = arith.constant dense<0xFF800000> : vector<1xf32>
    %524 = vector.multi_reduction <maximumf>, %523, %cst_115 [1, 2] : vector<1x8x128xf32> to vector<1xf32>
    %525 = vector.shape_cast %524 : vector<1xf32> to vector<1x1x1xf32>
    %526 = vector.extract %525[0, 0, 0] : f32 from vector<1x1x1xf32>
    %527 = vector.broadcast %526 : f32 to vector<8x128xf32>
    %528 = arith.cmpf oeq, %510, %527 : vector<8x128xf32>
    %c1024_i32_116 = arith.constant 1024 : i32
    %529 = vector.broadcast %c1024_i32_116 : i32 to vector<8x128xi32>
    %530 = arith.select %528, %15, %529 : vector<8x128xi1>, vector<8x128xi32>
    %531 = vector.shape_cast %530 : vector<8x128xi32> to vector<1x8x128xi32>
    %cst_117 = arith.constant dense<2147483647> : vector<1xi32>
    %532 = vector.multi_reduction <minsi>, %531, %cst_117 [1, 2] : vector<1x8x128xi32> to vector<1xi32>
    %533 = vector.shape_cast %532 : vector<1xi32> to vector<1x1x1xi32>
    %534 = vector.extract %533[0, 0, 0] : i32 from vector<1x1x1xi32>
    %cst_118 = arith.constant 0.000000e+00 : f32
    %535 = arith.cmpf ogt, %526, %cst_118 : f32
    %536 = vector.broadcast %534 : i32 to vector<8x128xi32>
    %537 = arith.cmpi eq, %15, %536 : vector<8x128xi32>
    %538 = vector.broadcast %535 : i1 to vector<8x128xi1>
    %539 = arith.andi %537, %538 : vector<8x128xi1>
    %cst_119 = arith.constant 1.000000e+00 : f32
    %540 = vector.broadcast %cst_119 : f32 to vector<8x128xf32>
    %541 = arith.select %539, %540, %512 : vector<8x128xi1>, vector<8x128xf32>
    %542 = arith.index_cast %arg0 : i32 to index
    %543 = arith.index_cast %465 : i32 to index
    %544 = memref.load %arg2[%542, %543] : memref<2x6xi32, #tpu.memory_space<smem>>
    %545 = vector.broadcast %544 : i32 to vector<8x128xi32>
    %546 = arith.select %539, %545, %514 : vector<8x128xi1>, vector<8x128xi32>
    %c4_i32_120 = arith.constant 4 : i32
    %547 = arith.muli %c4_i32_120, %465 : i32
    %c0_i32_121 = arith.constant 0 : i32
    %548 = arith.addi %547, %c0_i32_121 : i32
    %549 = arith.index_cast %arg0 : i32 to index
    %550 = arith.index_cast %548 : i32 to index
    %551 = memref.load %arg1[%549, %550] : memref<2x24xf32, #tpu.memory_space<smem>>
    %552 = vector.broadcast %551 : f32 to vector<8x128xf32>
    %553 = arith.select %539, %552, %516 : vector<8x128xi1>, vector<8x128xf32>
    %c4_i32_122 = arith.constant 4 : i32
    %554 = arith.muli %c4_i32_122, %465 : i32
    %c1_i32_123 = arith.constant 1 : i32
    %555 = arith.addi %554, %c1_i32_123 : i32
    %556 = arith.index_cast %arg0 : i32 to index
    %557 = arith.index_cast %555 : i32 to index
    %558 = memref.load %arg1[%556, %557] : memref<2x24xf32, #tpu.memory_space<smem>>
    %559 = vector.broadcast %558 : f32 to vector<8x128xf32>
    %560 = arith.select %539, %559, %518 : vector<8x128xi1>, vector<8x128xf32>
    %c4_i32_124 = arith.constant 4 : i32
    %561 = arith.muli %c4_i32_124, %465 : i32
    %c2_i32_125 = arith.constant 2 : i32
    %562 = arith.addi %561, %c2_i32_125 : i32
    %563 = arith.index_cast %arg0 : i32 to index
    %564 = arith.index_cast %562 : i32 to index
    %565 = memref.load %arg1[%563, %564] : memref<2x24xf32, #tpu.memory_space<smem>>
    %566 = vector.broadcast %565 : f32 to vector<8x128xf32>
    %567 = arith.select %539, %566, %520 : vector<8x128xi1>, vector<8x128xf32>
    %c4_i32_126 = arith.constant 4 : i32
    %568 = arith.muli %c4_i32_126, %465 : i32
    %c3_i32_127 = arith.constant 3 : i32
    %569 = arith.addi %568, %c3_i32_127 : i32
    %570 = arith.index_cast %arg0 : i32 to index
    %571 = arith.index_cast %569 : i32 to index
    %572 = memref.load %arg1[%570, %571] : memref<2x24xf32, #tpu.memory_space<smem>>
    %573 = vector.broadcast %572 : f32 to vector<8x128xf32>
    %574 = arith.select %539, %573, %522 : vector<8x128xi1>, vector<8x128xf32>
    %575 = arith.extui %535 : i1 to i32
    %576 = arith.addi %465, %575 : i32
    %c5_i32 = arith.constant 5 : i32
    %c4_i32_128 = arith.constant 4 : i32
    %577 = arith.muli %c4_i32_128, %c5_i32 : i32
    %c0_i32_129 = arith.constant 0 : i32
    %578 = arith.addi %577, %c0_i32_129 : i32
    %579 = arith.index_cast %arg0 : i32 to index
    %580 = arith.index_cast %578 : i32 to index
    %581 = memref.load %arg1[%579, %580] : memref<2x24xf32, #tpu.memory_space<smem>>
    %c4_i32_130 = arith.constant 4 : i32
    %582 = arith.muli %c4_i32_130, %c5_i32 : i32
    %c1_i32_131 = arith.constant 1 : i32
    %583 = arith.addi %582, %c1_i32_131 : i32
    %584 = arith.index_cast %arg0 : i32 to index
    %585 = arith.index_cast %583 : i32 to index
    %586 = memref.load %arg1[%584, %585] : memref<2x24xf32, #tpu.memory_space<smem>>
    %c4_i32_132 = arith.constant 4 : i32
    %587 = arith.muli %c4_i32_132, %c5_i32 : i32
    %c2_i32_133 = arith.constant 2 : i32
    %588 = arith.addi %587, %c2_i32_133 : i32
    %589 = arith.index_cast %arg0 : i32 to index
    %590 = arith.index_cast %588 : i32 to index
    %591 = memref.load %arg1[%589, %590] : memref<2x24xf32, #tpu.memory_space<smem>>
    %c4_i32_134 = arith.constant 4 : i32
    %592 = arith.muli %c4_i32_134, %c5_i32 : i32
    %c3_i32_135 = arith.constant 3 : i32
    %593 = arith.addi %592, %c3_i32_135 : i32
    %594 = arith.index_cast %arg0 : i32 to index
    %595 = arith.index_cast %593 : i32 to index
    %596 = memref.load %arg1[%594, %595] : memref<2x24xf32, #tpu.memory_space<smem>>
    %597 = arith.index_cast %arg0 : i32 to index
    %598 = arith.index_cast %c5_i32 : i32 to index
    %599 = memref.load %arg2[%597, %598] : memref<2x6xi32, #tpu.memory_space<smem>>
    %600 = vector.broadcast %591 : f32 to vector<8x128xf32>
    %601 = arith.minimumf %5, %600 : vector<8x128xf32>
    %602 = vector.broadcast %581 : f32 to vector<8x128xf32>
    %603 = arith.maximumf %1, %602 : vector<8x128xf32>
    %604 = arith.subf %601, %603 : vector<8x128xf32>
    %cst_136 = arith.constant 0.000000e+00 : f32
    %605 = vector.broadcast %cst_136 : f32 to vector<8x128xf32>
    %606 = arith.maximumf %604, %605 : vector<8x128xf32>
    %607 = vector.broadcast %596 : f32 to vector<8x128xf32>
    %608 = arith.minimumf %7, %607 : vector<8x128xf32>
    %609 = vector.broadcast %586 : f32 to vector<8x128xf32>
    %610 = arith.maximumf %3, %609 : vector<8x128xf32>
    %611 = arith.subf %608, %610 : vector<8x128xf32>
    %cst_137 = arith.constant 0.000000e+00 : f32
    %612 = vector.broadcast %cst_137 : f32 to vector<8x128xf32>
    %613 = arith.maximumf %611, %612 : vector<8x128xf32>
    %614 = arith.mulf %606, %613 : vector<8x128xf32>
    %615 = arith.subf %591, %581 : f32
    %616 = arith.subf %596, %586 : f32
    %617 = arith.mulf %615, %616 : f32
    %618 = vector.broadcast %617 : f32 to vector<8x128xf32>
    %619 = arith.addf %618, %10 : vector<8x128xf32>
    %620 = arith.subf %619, %614 : vector<8x128xf32>
    %621 = arith.divf %614, %620 : vector<8x128xf32>
    %622 = arith.cmpf ogt, %621, %541 : vector<8x128xf32>
    %623 = arith.select %622, %621, %541 : vector<8x128xi1>, vector<8x128xf32>
    %624 = vector.broadcast %599 : i32 to vector<8x128xi32>
    %625 = arith.select %622, %624, %546 : vector<8x128xi1>, vector<8x128xi32>
    %626 = vector.broadcast %581 : f32 to vector<8x128xf32>
    %627 = arith.select %622, %626, %553 : vector<8x128xi1>, vector<8x128xf32>
    %628 = vector.broadcast %586 : f32 to vector<8x128xf32>
    %629 = arith.select %622, %628, %560 : vector<8x128xi1>, vector<8x128xf32>
    %630 = vector.broadcast %591 : f32 to vector<8x128xf32>
    %631 = arith.select %622, %630, %567 : vector<8x128xi1>, vector<8x128xf32>
    %632 = vector.broadcast %596 : f32 to vector<8x128xf32>
    %633 = arith.select %622, %632, %574 : vector<8x128xi1>, vector<8x128xf32>
    %634 = vector.shape_cast %621 : vector<8x128xf32> to vector<1x8x128xf32>
    %cst_138 = arith.constant dense<0xFF800000> : vector<1xf32>
    %635 = vector.multi_reduction <maximumf>, %634, %cst_138 [1, 2] : vector<1x8x128xf32> to vector<1xf32>
    %636 = vector.shape_cast %635 : vector<1xf32> to vector<1x1x1xf32>
    %637 = vector.extract %636[0, 0, 0] : f32 from vector<1x1x1xf32>
    %638 = vector.broadcast %637 : f32 to vector<8x128xf32>
    %639 = arith.cmpf oeq, %621, %638 : vector<8x128xf32>
    %c1024_i32_139 = arith.constant 1024 : i32
    %640 = vector.broadcast %c1024_i32_139 : i32 to vector<8x128xi32>
    %641 = arith.select %639, %15, %640 : vector<8x128xi1>, vector<8x128xi32>
    %642 = vector.shape_cast %641 : vector<8x128xi32> to vector<1x8x128xi32>
    %cst_140 = arith.constant dense<2147483647> : vector<1xi32>
    %643 = vector.multi_reduction <minsi>, %642, %cst_140 [1, 2] : vector<1x8x128xi32> to vector<1xi32>
    %644 = vector.shape_cast %643 : vector<1xi32> to vector<1x1x1xi32>
    %645 = vector.extract %644[0, 0, 0] : i32 from vector<1x1x1xi32>
    %cst_141 = arith.constant 0.000000e+00 : f32
    %646 = arith.cmpf ogt, %637, %cst_141 : f32
    %647 = vector.broadcast %645 : i32 to vector<8x128xi32>
    %648 = arith.cmpi eq, %15, %647 : vector<8x128xi32>
    %649 = vector.broadcast %646 : i1 to vector<8x128xi1>
    %650 = arith.andi %648, %649 : vector<8x128xi1>
    %cst_142 = arith.constant 1.000000e+00 : f32
    %651 = vector.broadcast %cst_142 : f32 to vector<8x128xf32>
    %652 = arith.select %650, %651, %623 : vector<8x128xi1>, vector<8x128xf32>
    %653 = arith.index_cast %arg0 : i32 to index
    %654 = arith.index_cast %576 : i32 to index
    %655 = memref.load %arg2[%653, %654] : memref<2x6xi32, #tpu.memory_space<smem>>
    %656 = vector.broadcast %655 : i32 to vector<8x128xi32>
    %657 = arith.select %650, %656, %625 : vector<8x128xi1>, vector<8x128xi32>
    %c4_i32_143 = arith.constant 4 : i32
    %658 = arith.muli %c4_i32_143, %576 : i32
    %c0_i32_144 = arith.constant 0 : i32
    %659 = arith.addi %658, %c0_i32_144 : i32
    %660 = arith.index_cast %arg0 : i32 to index
    %661 = arith.index_cast %659 : i32 to index
    %662 = memref.load %arg1[%660, %661] : memref<2x24xf32, #tpu.memory_space<smem>>
    %663 = vector.broadcast %662 : f32 to vector<8x128xf32>
    %664 = arith.select %650, %663, %627 : vector<8x128xi1>, vector<8x128xf32>
    %c4_i32_145 = arith.constant 4 : i32
    %665 = arith.muli %c4_i32_145, %576 : i32
    %c1_i32_146 = arith.constant 1 : i32
    %666 = arith.addi %665, %c1_i32_146 : i32
    %667 = arith.index_cast %arg0 : i32 to index
    %668 = arith.index_cast %666 : i32 to index
    %669 = memref.load %arg1[%667, %668] : memref<2x24xf32, #tpu.memory_space<smem>>
    %670 = vector.broadcast %669 : f32 to vector<8x128xf32>
    %671 = arith.select %650, %670, %629 : vector<8x128xi1>, vector<8x128xf32>
    %c4_i32_147 = arith.constant 4 : i32
    %672 = arith.muli %c4_i32_147, %576 : i32
    %c2_i32_148 = arith.constant 2 : i32
    %673 = arith.addi %672, %c2_i32_148 : i32
    %674 = arith.index_cast %arg0 : i32 to index
    %675 = arith.index_cast %673 : i32 to index
    %676 = memref.load %arg1[%674, %675] : memref<2x24xf32, #tpu.memory_space<smem>>
    %677 = vector.broadcast %676 : f32 to vector<8x128xf32>
    %678 = arith.select %650, %677, %631 : vector<8x128xi1>, vector<8x128xf32>
    %c4_i32_149 = arith.constant 4 : i32
    %679 = arith.muli %c4_i32_149, %576 : i32
    %c3_i32_150 = arith.constant 3 : i32
    %680 = arith.addi %679, %c3_i32_150 : i32
    %681 = arith.index_cast %arg0 : i32 to index
    %682 = arith.index_cast %680 : i32 to index
    %683 = memref.load %arg1[%681, %682] : memref<2x24xf32, #tpu.memory_space<smem>>
    %684 = vector.broadcast %683 : f32 to vector<8x128xf32>
    %685 = arith.select %650, %684, %633 : vector<8x128xi1>, vector<8x128xf32>
    %686 = arith.extui %646 : i1 to i32
    %687 = arith.addi %576, %686 : i32
    %c6_i32 = arith.constant 6 : i32
    %cst_151 = arith.constant 5.000000e-01 : f32
    %688 = vector.broadcast %cst_151 : f32 to vector<8x128xf32>
    %689 = arith.cmpf olt, %652, %688 : vector<8x128xf32>
    %c0_i32_152 = arith.constant 0 : i32
    %690 = vector.broadcast %c0_i32_152 : i32 to vector<8x128xi32>
    %691 = arith.select %689, %690, %657 : vector<8x128xi1>, vector<8x128xi32>
    %cst_153 = arith.constant 4.000000e-01 : f32
    %692 = vector.broadcast %cst_153 : f32 to vector<8x128xf32>
    %693 = arith.cmpf olt, %652, %692 : vector<8x128xf32>
    %694 = arith.extui %693 : vector<8x128xi1> to vector<8x128xi32>
    %695 = arith.sitofp %694 : vector<8x128xi32> to vector<8x128xf32>
    %c0_i32_154 = arith.constant 0 : i32
    %696 = vector.broadcast %c0_i32_154 : i32 to vector<8x128xi32>
    %697 = arith.cmpi sgt, %691, %696 : vector<8x128xi32>
    %c0_155 = arith.constant 0 : index
    %c0_156 = arith.constant 0 : index
    %c0_157 = arith.constant 0 : index
    %698 = vector.load %arg4[%c0_155, %c0_156, %c0_157] : memref<4x8x128xf32, #tpu.memory_space<vmem>>, vector<1x8x128xf32>
    %699 = vector.shape_cast %698 : vector<1x8x128xf32> to vector<8x128xf32>
    %c1_158 = arith.constant 1 : index
    %c0_159 = arith.constant 0 : index
    %c0_160 = arith.constant 0 : index
    %700 = vector.load %arg4[%c1_158, %c0_159, %c0_160] : memref<4x8x128xf32, #tpu.memory_space<vmem>>, vector<1x8x128xf32>
    %701 = vector.shape_cast %700 : vector<1x8x128xf32> to vector<8x128xf32>
    %c2_161 = arith.constant 2 : index
    %c0_162 = arith.constant 0 : index
    %c0_163 = arith.constant 0 : index
    %702 = vector.load %arg4[%c2_161, %c0_162, %c0_163] : memref<4x8x128xf32, #tpu.memory_space<vmem>>, vector<1x8x128xf32>
    %703 = vector.shape_cast %702 : vector<1x8x128xf32> to vector<8x128xf32>
    %cst_164 = arith.constant 1.000000e+00 : f32
    %704 = vector.broadcast %cst_164 : f32 to vector<8x128xf32>
    %705 = arith.divf %704, %703 : vector<8x128xf32>
    %c3_165 = arith.constant 3 : index
    %c0_166 = arith.constant 0 : index
    %c0_167 = arith.constant 0 : index
    %706 = vector.load %arg4[%c3_165, %c0_166, %c0_167] : memref<4x8x128xf32, #tpu.memory_space<vmem>>, vector<1x8x128xf32>
    %707 = vector.shape_cast %706 : vector<1x8x128xf32> to vector<8x128xf32>
    %cst_168 = arith.constant 1.000000e+00 : f32
    %708 = vector.broadcast %cst_168 : f32 to vector<8x128xf32>
    %709 = arith.divf %708, %707 : vector<8x128xf32>
    %710 = arith.addf %664, %678 : vector<8x128xf32>
    %cst_169 = arith.constant 5.000000e-01 : f32
    %711 = vector.broadcast %cst_169 : f32 to vector<8x128xf32>
    %712 = arith.mulf %710, %711 : vector<8x128xf32>
    %713 = arith.addf %671, %685 : vector<8x128xf32>
    %cst_170 = arith.constant 5.000000e-01 : f32
    %714 = vector.broadcast %cst_170 : f32 to vector<8x128xf32>
    %715 = arith.mulf %713, %714 : vector<8x128xf32>
    %716 = arith.subf %678, %664 : vector<8x128xf32>
    %717 = arith.subf %685, %671 : vector<8x128xf32>
    %718 = arith.subf %712, %699 : vector<8x128xf32>
    %cst_171 = arith.constant 1.000000e+01 : f32
    %719 = vector.broadcast %cst_171 : f32 to vector<8x128xf32>
    %720 = arith.mulf %719, %705 : vector<8x128xf32>
    %721 = arith.mulf %718, %720 : vector<8x128xf32>
    %722 = arith.subf %715, %701 : vector<8x128xf32>
    %cst_172 = arith.constant 1.000000e+01 : f32
    %723 = vector.broadcast %cst_172 : f32 to vector<8x128xf32>
    %724 = arith.mulf %723, %709 : vector<8x128xf32>
    %725 = arith.mulf %722, %724 : vector<8x128xf32>
    %726 = arith.mulf %716, %705 : vector<8x128xf32>
    %727 = math.log %726 : vector<8x128xf32>
    %cst_173 = arith.constant 5.000000e+00 : f32
    %728 = vector.broadcast %cst_173 : f32 to vector<8x128xf32>
    %729 = arith.mulf %727, %728 : vector<8x128xf32>
    %730 = arith.mulf %717, %709 : vector<8x128xf32>
    %731 = math.log %730 : vector<8x128xf32>
    %cst_174 = arith.constant 5.000000e+00 : f32
    %732 = vector.broadcast %cst_174 : f32 to vector<8x128xf32>
    %733 = arith.mulf %731, %732 : vector<8x128xf32>
    %cst_175 = arith.constant 0.000000e+00 : f32
    %734 = vector.broadcast %cst_175 : f32 to vector<8x128xf32>
    %c0_176 = arith.constant 0 : index
    %c0_177 = arith.constant 0 : index
    %c0_178 = arith.constant 0 : index
    %c0_179 = arith.constant 0 : index
    %735 = vector.load %arg5[%c0_176, %c0_177, %c0_178, %c0_179] : memref<1x4x8x128xf32, #tpu.memory_space<vmem>>, vector<1x1x8x128xf32>
    %736 = vector.shape_cast %735 : vector<1x1x8x128xf32> to vector<8x128xf32>
    %737 = arith.subf %736, %721 : vector<8x128xf32>
    %738 = math.absf %737 : vector<8x128xf32>
    %cst_180 = arith.constant 1.000000e+00 : f32
    %739 = vector.broadcast %cst_180 : f32 to vector<8x128xf32>
    %740 = arith.cmpf olt, %738, %739 : vector<8x128xf32>
    %cst_181 = arith.constant 5.000000e-01 : f32
    %741 = vector.broadcast %cst_181 : f32 to vector<8x128xf32>
    %742 = arith.mulf %741, %737 : vector<8x128xf32>
    %743 = arith.mulf %742, %737 : vector<8x128xf32>
    %cst_182 = arith.constant 5.000000e-01 : f32
    %744 = vector.broadcast %cst_182 : f32 to vector<8x128xf32>
    %745 = arith.subf %738, %744 : vector<8x128xf32>
    %746 = arith.select %740, %743, %745 : vector<8x128xi1>, vector<8x128xf32>
    %747 = arith.addf %734, %746 : vector<8x128xf32>
    %c0_183 = arith.constant 0 : index
    %c1_184 = arith.constant 1 : index
    %c0_185 = arith.constant 0 : index
    %c0_186 = arith.constant 0 : index
    %748 = vector.load %arg5[%c0_183, %c1_184, %c0_185, %c0_186] : memref<1x4x8x128xf32, #tpu.memory_space<vmem>>, vector<1x1x8x128xf32>
    %749 = vector.shape_cast %748 : vector<1x1x8x128xf32> to vector<8x128xf32>
    %750 = arith.subf %749, %725 : vector<8x128xf32>
    %751 = math.absf %750 : vector<8x128xf32>
    %cst_187 = arith.constant 1.000000e+00 : f32
    %752 = vector.broadcast %cst_187 : f32 to vector<8x128xf32>
    %753 = arith.cmpf olt, %751, %752 : vector<8x128xf32>
    %cst_188 = arith.constant 5.000000e-01 : f32
    %754 = vector.broadcast %cst_188 : f32 to vector<8x128xf32>
    %755 = arith.mulf %754, %750 : vector<8x128xf32>
    %756 = arith.mulf %755, %750 : vector<8x128xf32>
    %cst_189 = arith.constant 5.000000e-01 : f32
    %757 = vector.broadcast %cst_189 : f32 to vector<8x128xf32>
    %758 = arith.subf %751, %757 : vector<8x128xf32>
    %759 = arith.select %753, %756, %758 : vector<8x128xi1>, vector<8x128xf32>
    %760 = arith.addf %747, %759 : vector<8x128xf32>
    %c0_190 = arith.constant 0 : index
    %c2_191 = arith.constant 2 : index
    %c0_192 = arith.constant 0 : index
    %c0_193 = arith.constant 0 : index
    %761 = vector.load %arg5[%c0_190, %c2_191, %c0_192, %c0_193] : memref<1x4x8x128xf32, #tpu.memory_space<vmem>>, vector<1x1x8x128xf32>
    %762 = vector.shape_cast %761 : vector<1x1x8x128xf32> to vector<8x128xf32>
    %763 = arith.subf %762, %729 : vector<8x128xf32>
    %764 = math.absf %763 : vector<8x128xf32>
    %cst_194 = arith.constant 1.000000e+00 : f32
    %765 = vector.broadcast %cst_194 : f32 to vector<8x128xf32>
    %766 = arith.cmpf olt, %764, %765 : vector<8x128xf32>
    %cst_195 = arith.constant 5.000000e-01 : f32
    %767 = vector.broadcast %cst_195 : f32 to vector<8x128xf32>
    %768 = arith.mulf %767, %763 : vector<8x128xf32>
    %769 = arith.mulf %768, %763 : vector<8x128xf32>
    %cst_196 = arith.constant 5.000000e-01 : f32
    %770 = vector.broadcast %cst_196 : f32 to vector<8x128xf32>
    %771 = arith.subf %764, %770 : vector<8x128xf32>
    %772 = arith.select %766, %769, %771 : vector<8x128xi1>, vector<8x128xf32>
    %773 = arith.addf %760, %772 : vector<8x128xf32>
    %c0_197 = arith.constant 0 : index
    %c3_198 = arith.constant 3 : index
    %c0_199 = arith.constant 0 : index
    %c0_200 = arith.constant 0 : index
    %774 = vector.load %arg5[%c0_197, %c3_198, %c0_199, %c0_200] : memref<1x4x8x128xf32, #tpu.memory_space<vmem>>, vector<1x1x8x128xf32>
    %775 = vector.shape_cast %774 : vector<1x1x8x128xf32> to vector<8x128xf32>
    %776 = arith.subf %775, %733 : vector<8x128xf32>
    %777 = math.absf %776 : vector<8x128xf32>
    %cst_201 = arith.constant 1.000000e+00 : f32
    %778 = vector.broadcast %cst_201 : f32 to vector<8x128xf32>
    %779 = arith.cmpf olt, %777, %778 : vector<8x128xf32>
    %cst_202 = arith.constant 5.000000e-01 : f32
    %780 = vector.broadcast %cst_202 : f32 to vector<8x128xf32>
    %781 = arith.mulf %780, %776 : vector<8x128xf32>
    %782 = arith.mulf %781, %776 : vector<8x128xf32>
    %cst_203 = arith.constant 5.000000e-01 : f32
    %783 = vector.broadcast %cst_203 : f32 to vector<8x128xf32>
    %784 = arith.subf %777, %783 : vector<8x128xf32>
    %785 = arith.select %779, %782, %784 : vector<8x128xi1>, vector<8x128xf32>
    %786 = arith.addf %773, %785 : vector<8x128xf32>
    %cst_204 = arith.constant 0.000000e+00 : f32
    %787 = vector.broadcast %cst_204 : f32 to vector<8x128xf32>
    %788 = arith.select %697, %786, %787 : vector<8x128xi1>, vector<8x128xf32>
    %c0_205 = arith.constant 0 : index
    %c0_206 = arith.constant 0 : index
    %c0_207 = arith.constant 0 : index
    %c0_208 = arith.constant 0 : index
    %789 = vector.load %arg6[%c0_205, %c0_206, %c0_207, %c0_208] : memref<1x8x8x128xf32, #tpu.memory_space<vmem>>, vector<1x1x8x128xf32>
    %790 = vector.shape_cast %789 : vector<1x1x8x128xf32> to vector<8x128xf32>
    %c0_209 = arith.constant 0 : index
    %c1_210 = arith.constant 1 : index
    %c0_211 = arith.constant 0 : index
    %c0_212 = arith.constant 0 : index
    %791 = vector.load %arg6[%c0_209, %c1_210, %c0_211, %c0_212] : memref<1x8x8x128xf32, #tpu.memory_space<vmem>>, vector<1x1x8x128xf32>
    %792 = vector.shape_cast %791 : vector<1x1x8x128xf32> to vector<8x128xf32>
    %793 = arith.maximumf %790, %792 : vector<8x128xf32>
    %c0_213 = arith.constant 0 : index
    %c2_214 = arith.constant 2 : index
    %c0_215 = arith.constant 0 : index
    %c0_216 = arith.constant 0 : index
    %794 = vector.load %arg6[%c0_213, %c2_214, %c0_215, %c0_216] : memref<1x8x8x128xf32, #tpu.memory_space<vmem>>, vector<1x1x8x128xf32>
    %795 = vector.shape_cast %794 : vector<1x1x8x128xf32> to vector<8x128xf32>
    %796 = arith.maximumf %793, %795 : vector<8x128xf32>
    %c0_217 = arith.constant 0 : index
    %c3_218 = arith.constant 3 : index
    %c0_219 = arith.constant 0 : index
    %c0_220 = arith.constant 0 : index
    %797 = vector.load %arg6[%c0_217, %c3_218, %c0_219, %c0_220] : memref<1x8x8x128xf32, #tpu.memory_space<vmem>>, vector<1x1x8x128xf32>
    %798 = vector.shape_cast %797 : vector<1x1x8x128xf32> to vector<8x128xf32>
    %799 = arith.maximumf %796, %798 : vector<8x128xf32>
    %c0_221 = arith.constant 0 : index
    %c4 = arith.constant 4 : index
    %c0_222 = arith.constant 0 : index
    %c0_223 = arith.constant 0 : index
    %800 = vector.load %arg6[%c0_221, %c4, %c0_222, %c0_223] : memref<1x8x8x128xf32, #tpu.memory_space<vmem>>, vector<1x1x8x128xf32>
    %801 = vector.shape_cast %800 : vector<1x1x8x128xf32> to vector<8x128xf32>
    %802 = arith.maximumf %799, %801 : vector<8x128xf32>
    %c0_224 = arith.constant 0 : index
    %c5 = arith.constant 5 : index
    %c0_225 = arith.constant 0 : index
    %c0_226 = arith.constant 0 : index
    %803 = vector.load %arg6[%c0_224, %c5, %c0_225, %c0_226] : memref<1x8x8x128xf32, #tpu.memory_space<vmem>>, vector<1x1x8x128xf32>
    %804 = vector.shape_cast %803 : vector<1x1x8x128xf32> to vector<8x128xf32>
    %805 = arith.maximumf %802, %804 : vector<8x128xf32>
    %c0_227 = arith.constant 0 : index
    %c6 = arith.constant 6 : index
    %c0_228 = arith.constant 0 : index
    %c0_229 = arith.constant 0 : index
    %806 = vector.load %arg6[%c0_227, %c6, %c0_228, %c0_229] : memref<1x8x8x128xf32, #tpu.memory_space<vmem>>, vector<1x1x8x128xf32>
    %807 = vector.shape_cast %806 : vector<1x1x8x128xf32> to vector<8x128xf32>
    %808 = arith.maximumf %805, %807 : vector<8x128xf32>
    %c0_230 = arith.constant 0 : index
    %c7 = arith.constant 7 : index
    %c0_231 = arith.constant 0 : index
    %c0_232 = arith.constant 0 : index
    %809 = vector.load %arg6[%c0_230, %c7, %c0_231, %c0_232] : memref<1x8x8x128xf32, #tpu.memory_space<vmem>>, vector<1x1x8x128xf32>
    %810 = vector.shape_cast %809 : vector<1x1x8x128xf32> to vector<8x128xf32>
    %811 = arith.maximumf %808, %810 : vector<8x128xf32>
    %cst_233 = arith.constant 0.000000e+00 : f32
    %812 = vector.broadcast %cst_233 : f32 to vector<8x128xf32>
    %cst_234 = arith.constant 0.000000e+00 : f32
    %813 = vector.broadcast %cst_234 : f32 to vector<8x128xf32>
    %c0_235 = arith.constant 0 : index
    %c0_236 = arith.constant 0 : index
    %c0_237 = arith.constant 0 : index
    %c0_238 = arith.constant 0 : index
    %814 = vector.load %arg6[%c0_235, %c0_236, %c0_237, %c0_238] : memref<1x8x8x128xf32, #tpu.memory_space<vmem>>, vector<1x1x8x128xf32>
    %815 = vector.shape_cast %814 : vector<1x1x8x128xf32> to vector<8x128xf32>
    %816 = arith.subf %815, %811 : vector<8x128xf32>
    %817 = math.exp %816 : vector<8x128xf32>
    %818 = arith.addf %812, %817 : vector<8x128xf32>
    %c0_i32_239 = arith.constant 0 : i32
    %819 = vector.broadcast %c0_i32_239 : i32 to vector<8x128xi32>
    %820 = arith.cmpi eq, %691, %819 : vector<8x128xi32>
    %cst_240 = arith.constant 0.000000e+00 : f32
    %821 = vector.broadcast %cst_240 : f32 to vector<8x128xf32>
    %822 = arith.select %820, %815, %821 : vector<8x128xi1>, vector<8x128xf32>
    %823 = arith.addf %813, %822 : vector<8x128xf32>
    %c0_241 = arith.constant 0 : index
    %c1_242 = arith.constant 1 : index
    %c0_243 = arith.constant 0 : index
    %c0_244 = arith.constant 0 : index
    %824 = vector.load %arg6[%c0_241, %c1_242, %c0_243, %c0_244] : memref<1x8x8x128xf32, #tpu.memory_space<vmem>>, vector<1x1x8x128xf32>
    %825 = vector.shape_cast %824 : vector<1x1x8x128xf32> to vector<8x128xf32>
    %826 = arith.subf %825, %811 : vector<8x128xf32>
    %827 = math.exp %826 : vector<8x128xf32>
    %828 = arith.addf %818, %827 : vector<8x128xf32>
    %c1_i32_245 = arith.constant 1 : i32
    %829 = vector.broadcast %c1_i32_245 : i32 to vector<8x128xi32>
    %830 = arith.cmpi eq, %691, %829 : vector<8x128xi32>
    %cst_246 = arith.constant 0.000000e+00 : f32
    %831 = vector.broadcast %cst_246 : f32 to vector<8x128xf32>
    %832 = arith.select %830, %825, %831 : vector<8x128xi1>, vector<8x128xf32>
    %833 = arith.addf %823, %832 : vector<8x128xf32>
    %c0_247 = arith.constant 0 : index
    %c2_248 = arith.constant 2 : index
    %c0_249 = arith.constant 0 : index
    %c0_250 = arith.constant 0 : index
    %834 = vector.load %arg6[%c0_247, %c2_248, %c0_249, %c0_250] : memref<1x8x8x128xf32, #tpu.memory_space<vmem>>, vector<1x1x8x128xf32>
    %835 = vector.shape_cast %834 : vector<1x1x8x128xf32> to vector<8x128xf32>
    %836 = arith.subf %835, %811 : vector<8x128xf32>
    %837 = math.exp %836 : vector<8x128xf32>
    %838 = arith.addf %828, %837 : vector<8x128xf32>
    %c2_i32_251 = arith.constant 2 : i32
    %839 = vector.broadcast %c2_i32_251 : i32 to vector<8x128xi32>
    %840 = arith.cmpi eq, %691, %839 : vector<8x128xi32>
    %cst_252 = arith.constant 0.000000e+00 : f32
    %841 = vector.broadcast %cst_252 : f32 to vector<8x128xf32>
    %842 = arith.select %840, %835, %841 : vector<8x128xi1>, vector<8x128xf32>
    %843 = arith.addf %833, %842 : vector<8x128xf32>
    %c0_253 = arith.constant 0 : index
    %c3_254 = arith.constant 3 : index
    %c0_255 = arith.constant 0 : index
    %c0_256 = arith.constant 0 : index
    %844 = vector.load %arg6[%c0_253, %c3_254, %c0_255, %c0_256] : memref<1x8x8x128xf32, #tpu.memory_space<vmem>>, vector<1x1x8x128xf32>
    %845 = vector.shape_cast %844 : vector<1x1x8x128xf32> to vector<8x128xf32>
    %846 = arith.subf %845, %811 : vector<8x128xf32>
    %847 = math.exp %846 : vector<8x128xf32>
    %848 = arith.addf %838, %847 : vector<8x128xf32>
    %c3_i32_257 = arith.constant 3 : i32
    %849 = vector.broadcast %c3_i32_257 : i32 to vector<8x128xi32>
    %850 = arith.cmpi eq, %691, %849 : vector<8x128xi32>
    %cst_258 = arith.constant 0.000000e+00 : f32
    %851 = vector.broadcast %cst_258 : f32 to vector<8x128xf32>
    %852 = arith.select %850, %845, %851 : vector<8x128xi1>, vector<8x128xf32>
    %853 = arith.addf %843, %852 : vector<8x128xf32>
    %c0_259 = arith.constant 0 : index
    %c4_260 = arith.constant 4 : index
    %c0_261 = arith.constant 0 : index
    %c0_262 = arith.constant 0 : index
    %854 = vector.load %arg6[%c0_259, %c4_260, %c0_261, %c0_262] : memref<1x8x8x128xf32, #tpu.memory_space<vmem>>, vector<1x1x8x128xf32>
    %855 = vector.shape_cast %854 : vector<1x1x8x128xf32> to vector<8x128xf32>
    %856 = arith.subf %855, %811 : vector<8x128xf32>
    %857 = math.exp %856 : vector<8x128xf32>
    %858 = arith.addf %848, %857 : vector<8x128xf32>
    %c4_i32_263 = arith.constant 4 : i32
    %859 = vector.broadcast %c4_i32_263 : i32 to vector<8x128xi32>
    %860 = arith.cmpi eq, %691, %859 : vector<8x128xi32>
    %cst_264 = arith.constant 0.000000e+00 : f32
    %861 = vector.broadcast %cst_264 : f32 to vector<8x128xf32>
    %862 = arith.select %860, %855, %861 : vector<8x128xi1>, vector<8x128xf32>
    %863 = arith.addf %853, %862 : vector<8x128xf32>
    %c0_265 = arith.constant 0 : index
    %c5_266 = arith.constant 5 : index
    %c0_267 = arith.constant 0 : index
    %c0_268 = arith.constant 0 : index
    %864 = vector.load %arg6[%c0_265, %c5_266, %c0_267, %c0_268] : memref<1x8x8x128xf32, #tpu.memory_space<vmem>>, vector<1x1x8x128xf32>
    %865 = vector.shape_cast %864 : vector<1x1x8x128xf32> to vector<8x128xf32>
    %866 = arith.subf %865, %811 : vector<8x128xf32>
    %867 = math.exp %866 : vector<8x128xf32>
    %868 = arith.addf %858, %867 : vector<8x128xf32>
    %c5_i32_269 = arith.constant 5 : i32
    %869 = vector.broadcast %c5_i32_269 : i32 to vector<8x128xi32>
    %870 = arith.cmpi eq, %691, %869 : vector<8x128xi32>
    %cst_270 = arith.constant 0.000000e+00 : f32
    %871 = vector.broadcast %cst_270 : f32 to vector<8x128xf32>
    %872 = arith.select %870, %865, %871 : vector<8x128xi1>, vector<8x128xf32>
    %873 = arith.addf %863, %872 : vector<8x128xf32>
    %c0_271 = arith.constant 0 : index
    %c6_272 = arith.constant 6 : index
    %c0_273 = arith.constant 0 : index
    %c0_274 = arith.constant 0 : index
    %874 = vector.load %arg6[%c0_271, %c6_272, %c0_273, %c0_274] : memref<1x8x8x128xf32, #tpu.memory_space<vmem>>, vector<1x1x8x128xf32>
    %875 = vector.shape_cast %874 : vector<1x1x8x128xf32> to vector<8x128xf32>
    %876 = arith.subf %875, %811 : vector<8x128xf32>
    %877 = math.exp %876 : vector<8x128xf32>
    %878 = arith.addf %868, %877 : vector<8x128xf32>
    %c6_i32_275 = arith.constant 6 : i32
    %879 = vector.broadcast %c6_i32_275 : i32 to vector<8x128xi32>
    %880 = arith.cmpi eq, %691, %879 : vector<8x128xi32>
    %cst_276 = arith.constant 0.000000e+00 : f32
    %881 = vector.broadcast %cst_276 : f32 to vector<8x128xf32>
    %882 = arith.select %880, %875, %881 : vector<8x128xi1>, vector<8x128xf32>
    %883 = arith.addf %873, %882 : vector<8x128xf32>
    %c0_277 = arith.constant 0 : index
    %c7_278 = arith.constant 7 : index
    %c0_279 = arith.constant 0 : index
    %c0_280 = arith.constant 0 : index
    %884 = vector.load %arg6[%c0_277, %c7_278, %c0_279, %c0_280] : memref<1x8x8x128xf32, #tpu.memory_space<vmem>>, vector<1x1x8x128xf32>
    %885 = vector.shape_cast %884 : vector<1x1x8x128xf32> to vector<8x128xf32>
    %886 = arith.subf %885, %811 : vector<8x128xf32>
    %887 = math.exp %886 : vector<8x128xf32>
    %888 = arith.addf %878, %887 : vector<8x128xf32>
    %c7_i32 = arith.constant 7 : i32
    %889 = vector.broadcast %c7_i32 : i32 to vector<8x128xi32>
    %890 = arith.cmpi eq, %691, %889 : vector<8x128xi32>
    %cst_281 = arith.constant 0.000000e+00 : f32
    %891 = vector.broadcast %cst_281 : f32 to vector<8x128xf32>
    %892 = arith.select %890, %885, %891 : vector<8x128xi1>, vector<8x128xf32>
    %893 = arith.addf %883, %892 : vector<8x128xf32>
    %894 = math.log %888 : vector<8x128xf32>
    %895 = arith.addf %811, %894 : vector<8x128xf32>
    %896 = arith.subf %895, %893 : vector<8x128xf32>
    %c0_282 = arith.constant 0 : index
    %c0_283 = arith.constant 0 : index
    %c0_284 = arith.constant 0 : index
    %c0_285 = arith.constant 0 : index
    %897 = vector.load %arg7[%c0_282, %c0_283, %c0_284, %c0_285] : memref<1x4x8x128xf32, #tpu.memory_space<vmem>>, vector<1x1x8x128xf32>
    %898 = vector.shape_cast %897 : vector<1x1x8x128xf32> to vector<8x128xf32>
    %899 = vector.shape_cast %896 : vector<8x128xf32> to vector<1x1x8x128xf32>
    tpu.vector_store %arg7[%c0_282, %c0_283, %c0_284, %c0_285], %899 {strides = array<i32>} : memref<1x4x8x128xf32, #tpu.memory_space<vmem>>, vector<1x1x8x128xf32>,
    %c0_286 = arith.constant 0 : index
    %c1_287 = arith.constant 1 : index
    %c0_288 = arith.constant 0 : index
    %c0_289 = arith.constant 0 : index
    %900 = vector.load %arg7[%c0_286, %c1_287, %c0_288, %c0_289] : memref<1x4x8x128xf32, #tpu.memory_space<vmem>>, vector<1x1x8x128xf32>
    %901 = vector.shape_cast %900 : vector<1x1x8x128xf32> to vector<8x128xf32>
    %902 = vector.shape_cast %788 : vector<8x128xf32> to vector<1x1x8x128xf32>
    tpu.vector_store %arg7[%c0_286, %c1_287, %c0_288, %c0_289], %902 {strides = array<i32>} : memref<1x4x8x128xf32, #tpu.memory_space<vmem>>, vector<1x1x8x128xf32>,
    %903 = arith.sitofp %691 : vector<8x128xi32> to vector<8x128xf32>
    %c0_290 = arith.constant 0 : index
    %c2_291 = arith.constant 2 : index
    %c0_292 = arith.constant 0 : index
    %c0_293 = arith.constant 0 : index
    %904 = vector.load %arg7[%c0_290, %c2_291, %c0_292, %c0_293] : memref<1x4x8x128xf32, #tpu.memory_space<vmem>>, vector<1x1x8x128xf32>
    %905 = vector.shape_cast %904 : vector<1x1x8x128xf32> to vector<8x128xf32>
    %906 = vector.shape_cast %903 : vector<8x128xf32> to vector<1x1x8x128xf32>
    tpu.vector_store %arg7[%c0_290, %c2_291, %c0_292, %c0_293], %906 {strides = array<i32>} : memref<1x4x8x128xf32, #tpu.memory_space<vmem>>, vector<1x1x8x128xf32>,
    %c0_294 = arith.constant 0 : index
    %c3_295 = arith.constant 3 : index
    %c0_296 = arith.constant 0 : index
    %c0_297 = arith.constant 0 : index
    %907 = vector.load %arg7[%c0_294, %c3_295, %c0_296, %c0_297] : memref<1x4x8x128xf32, #tpu.memory_space<vmem>>, vector<1x1x8x128xf32>
    %908 = vector.shape_cast %907 : vector<1x1x8x128xf32> to vector<8x128xf32>
    %909 = vector.shape_cast %695 : vector<8x128xf32> to vector<1x1x8x128xf32>
    tpu.vector_store %arg7[%c0_294, %c3_295, %c0_296, %c0_297], %909 {strides = array<i32>} : memref<1x4x8x128xf32, #tpu.memory_space<vmem>>, vector<1x1x8x128xf32>,
    return
  }
  func.func @transform_0(%arg0: i32) -> (i32, i32) {
    %c0_i32 = arith.constant 0 : i32
    %c0_i32_0 = arith.constant 0 : i32
    %c0_i32_1 = arith.constant 0 : i32
    return %c0_i32, %c0_i32_0 : i32, i32
  }
  func.func @transform_1(%arg0: i32) -> (i32, i32) {
    %c0_i32 = arith.constant 0 : i32
    %c0_i32_0 = arith.constant 0 : i32
    %c0_i32_1 = arith.constant 0 : i32
    return %c0_i32, %c0_i32_0 : i32, i32
  }
  func.func @transform_2(%arg0: i32) -> (i32, i32, i32) {
    %c0_i32 = arith.constant 0 : i32
    %c0_i32_0 = arith.constant 0 : i32
    %c0_i32_1 = arith.constant 0 : i32
    %c0_i32_2 = arith.constant 0 : i32
    return %c0_i32, %c0_i32_0, %c0_i32_1 : i32, i32, i32
  }
  func.func @transform_3(%arg0: i32) -> (i32, i32, i32) {
    %c0_i32 = arith.constant 0 : i32
    %c0_i32_0 = arith.constant 0 : i32
    %c0_i32_1 = arith.constant 0 : i32
    %c0_i32_2 = arith.constant 0 : i32
    return %c0_i32, %c0_i32_0, %c0_i32_1 : i32, i32, i32
  }
  func.func @transform_4(%arg0: i32) -> (i32, i32, i32, i32) {
    %c0_i32 = arith.constant 0 : i32
    %c0_i32_0 = arith.constant 0 : i32
    %c0_i32_1 = arith.constant 0 : i32
    %c0_i32_2 = arith.constant 0 : i32
    return %arg0, %c0_i32, %c0_i32_0, %c0_i32_1 : i32, i32, i32, i32
  }
  func.func @transform_5(%arg0: i32) -> (i32, i32, i32, i32) {
    %c0_i32 = arith.constant 0 : i32
    %c0_i32_0 = arith.constant 0 : i32
    %c0_i32_1 = arith.constant 0 : i32
    %c0_i32_2 = arith.constant 0 : i32
    return %arg0, %c0_i32, %c0_i32_0, %c0_i32_1 : i32, i32, i32, i32
  }
  func.func @transform_6(%arg0: i32) -> (i32, i32, i32, i32) {
    %c0_i32 = arith.constant 0 : i32
    %c0_i32_0 = arith.constant 0 : i32
    %c0_i32_1 = arith.constant 0 : i32
    %c0_i32_2 = arith.constant 0 : i32
    return %arg0, %c0_i32, %c0_i32_0, %c0_i32_1 : i32, i32, i32, i32
  }
}

</mosaic_0001>

<llo_original>
// kernel: tpu_custom_call.1
$region0: #{tpu_custom_call.1}
  #allocation0 [shape = 'u32[]', space=smem, size = 0x4, offset = 0x4, fixed_abs, tag = 'smem constant byte address 0x4 - core index']
  #allocation1 [shape = 'u32[72,128]{1,0:T(1,128)}', space=vmem, size = 0x9000, scoped, tag = 'internal scratch']
  %s0 = inlined_call_operand.hbm [shape: f32[2,24], index: 0, kind: input, shape index: {}]
  %s1 = inlined_call_operand.hbm [shape: s32[2,6], index: 1, kind: input, shape index: {}]
  %s2 = inlined_call_operand.hbm [shape: f32[4,8,128], index: 2, kind: input, shape index: {}]
  %s3 = inlined_call_operand.hbm [shape: f32[4,8,128], index: 3, kind: input, shape index: {}]
  %s4 = inlined_call_operand.hbm [shape: f32[2,4,8,128], index: 4, kind: input, shape index: {}]
  %s5 = inlined_call_operand.hbm [shape: f32[2,8,8,128], index: 5, kind: input, shape index: {}]
  %s6 = inlined_call_operand.hbm [shape: f32[2,4,8,128], index: 6, kind: output, shape index: {}]
  %s7 = sld [smem:[#allocation0]]
  $region81: #{tpu_custom_call.1} parent=0
    _
  %s9 = ssub.s32 1, %s7
  %s10 = scalar_select 0, %s9, %s7
  $region1: #{tpu_custom_call.1} parent=0
    #allocation2 [shape = 'u8[1024]{0}', space=smem, size = 0x400, scoped, tag = 'input window, operand 0, single buffered']
    #allocation3 [shape = 's32[2]{0}', space=sflag, size = 0x8, scoped, tag = 'scoped memory for tpu_custom_call.1']
    #allocation4 [shape = 's32[2]{0}', space=sflag, size = 0x8, scoped, tag = 'scoped memory for tpu_custom_call.1']
    #allocation5 [shape = 's32[2]{0}', space=sflag, size = 0x8, scoped, tag = 'scoped memory for tpu_custom_call.1']
    #allocation6 [shape = 'u8[1024]{0}', space=smem, size = 0x400, scoped, tag = 'input window, operand 1, single buffered']
    #allocation7 [shape = 's32[1]{0}', space=sflag, size = 0x4, scoped, tag = 'scoped memory for tpu_custom_call.1']
    #allocation8 [shape = 'u8[16384]{0}', space=vmem, size = 0x4000, scoped, tag = 'input window, operand 2, single buffered']
    #allocation9 [shape = 'u8[16384]{0}', space=vmem, size = 0x4000, scoped, tag = 'input window, operand 3, single buffered']
    #allocation10 [shape = 's32[1]{0}', space=sflag, size = 0x4, scoped, tag = 'scoped memory for tpu_custom_call.1']
    #allocation11 [shape = 'u8[32768]{0}', space=vmem, size = 0x8000, scoped, tag = 'input window, operand 4']
    #allocation12 [shape = 'u8[65536]{0}', space=vmem, size = 0x10000, scoped, tag = 'input window, operand 5']
    #allocation13 [shape = 'u8[32768]{0}', space=vmem, size = 0x8000, scoped, tag = 'output window, operand 0']
    %11 = vsyncpa [#allocation5], 0
    %12 = vsyncpa [#allocation7], 0
    %13 = vsyncpa [#allocation3], 0
    %14 = vsyncpa [#allocation10], 0
    %15 = vsyncpa [#allocation4], 0
    %s16 = scalar_lea.sflag [#allocation4], 1
    %17 = vsyncpa %s16, 0
    loop: start=0, step=1, limit=4
    $region2: #{tpu_custom_call.1} parent=1 // loop_pre_header
      _
    $region3: #{tpu_custom_call.1} parent=1 // loop_header
      %s19 = sphi 0, %s23
      %p20 = scmp.ge.s32.totalorder %s19, 4
      %s27 = sphi 0, %s27
      %s29 = sphi 0, %s27
      %s30 = sphi 0, %s29
      %s44 = sphi 0, %s30
      %s48 = sphi 0, %s48
      %s50 = sphi 0, %s48
      %s51 = sphi 0, %s50
      %s65 = sphi 0, %s51
      %s69 = sphi 0, %s69
      %s71 = sphi 0, %s69
      %s72 = sphi 0, %s71
      %s86 = sphi 0, %s72
      %s90 = sphi 0, %s90
      %s92 = sphi 0, %s90
      %s93 = sphi 0, %s92
      %s107 = sphi 0, %s93
      %s113 = sphi 0, %s115
      %s116 = sphi 0, %s113
      %s117 = sphi 0, %s116
      %s133 = sphi 0, %s117
      %s139 = sphi 0, %s141
      %s142 = sphi 0, %s139
      %s143 = sphi 0, %s142
      %s159 = sphi 0, %s143
      %s165 = sphi 0, %s167
      %s168 = sphi 0, %s165
      %s169 = sphi 0, %s168
      %s185 = sphi 0, %s169
    $region4: #{tpu_custom_call.1} parent=1 // loop_header_branch
      %22 = sbr.rel (%p20) target = $region8
    $region5: #{tpu_custom_call.1} parent=1 // loop_body
      %s24 = ssub.s32 %s19, 1
      %s25 = ssub.s32 %s19, 2
      %s26 = sadd.s32 %s19, 1
      %s28 = sadd.s32 %s27, 1
      %p31 = scmp.eq.s32.totalorder %s19, 1
      %p32 = scmp.ne.s32.totalorder %s27, %s29
      %p33 = scmp.eq.s32.totalorder %s19, 0
      %p34 = por %p32, %p33
      %p35 = scmp.ne.s32.totalorder %s27, %s29
      %p36 = scmp.eq.s32.totalorder %s24, 1
      %p37 = por %p35, %p36
      %p38 = scmp.ne.s32.totalorder %s29, %s30
      %p39 = scmp.eq.s32.totalorder %s24, 0
      %p40 = por %p38, %p39
      %p41 = scmp.ne.s32.totalorder %s29, %s30
      %p42 = scmp.eq.s32.totalorder %s25, 1
      %p43 = por %p41, %p42
      %p45 = scmp.ne.s32.totalorder %s30, %s44
      %p46 = scmp.eq.s32.totalorder %s25, 0
      %p47 = por %p45, %p46
      %s49 = sadd.s32 %s48, 1
      %p52 = scmp.eq.s32.totalorder %s19, 1
      %p53 = scmp.ne.s32.totalorder %s48, %s50
      %p54 = scmp.eq.s32.totalorder %s19, 0
      %p55 = por %p53, %p54
      %p56 = scmp.ne.s32.totalorder %s48, %s50
      %p57 = scmp.eq.s32.totalorder %s24, 1
      %p58 = por %p56, %p57
      %p59 = scmp.ne.s32.totalorder %s50, %s51
      %p60 = scmp.eq.s32.totalorder %s24, 0
      %p61 = por %p59, %p60
      %p62 = scmp.ne.s32.totalorder %s50, %s51
      %p63 = scmp.eq.s32.totalorder %s25, 1
      %p64 = por %p62, %p63
      %p66 = scmp.ne.s32.totalorder %s51, %s65
      %p67 = scmp.eq.s32.totalorder %s25, 0
      %p68 = por %p66, %p67
      %s70 = sadd.s32 %s69, 1
      %p73 = scmp.eq.s32.totalorder %s19, 1
      %p74 = scmp.ne.s32.totalorder %s69, %s71
      %p75 = scmp.eq.s32.totalorder %s19, 0
      %p76 = por %p74, %p75
      %p77 = scmp.ne.s32.totalorder %s69, %s71
      %p78 = scmp.eq.s32.totalorder %s24, 1
      %p79 = por %p77, %p78
      %p80 = scmp.ne.s32.totalorder %s71, %s72
      %p81 = scmp.eq.s32.totalorder %s24, 0
      %p82 = por %p80, %p81
      %p83 = scmp.ne.s32.totalorder %s71, %s72
      %p84 = scmp.eq.s32.totalorder %s25, 1
      %p85 = por %p83, %p84
      %p87 = scmp.ne.s32.totalorder %s72, %s86
      %p88 = scmp.eq.s32.totalorder %s25, 0
      %p89 = por %p87, %p88
      %s91 = sadd.s32 %s90, 1
      %p94 = scmp.eq.s32.totalorder %s19, 1
      %p95 = scmp.ne.s32.totalorder %s90, %s92
      %p96 = scmp.eq.s32.totalorder %s19, 0
      %p97 = por %p95, %p96
      %p98 = scmp.ne.s32.totalorder %s90, %s92
      %p99 = scmp.eq.s32.totalorder %s24, 1
      %p100 = por %p98, %p99
      %p101 = scmp.ne.s32.totalorder %s92, %s93
      %p102 = scmp.eq.s32.totalorder %s24, 0
      %p103 = por %p101, %p102
      %p104 = scmp.ne.s32.totalorder %s92, %s93
      %p105 = scmp.eq.s32.totalorder %s25, 1
      %p106 = por %p104, %p105
      %p108 = scmp.ne.s32.totalorder %s93, %s107
      %p109 = scmp.eq.s32.totalorder %s25, 0
      %p110 = por %p108, %p109
      %s111 = ssub.s32 %s19, %s26
      %p112 = scmp.eq.s32.totalorder %s111, 0
      %s114 = sadd.s32 %s113, 1
      %s115 = scalar_select %p112, %s113, %s114
      %p118 = pneg %p112
      %p119 = scmp.eq.s32.totalorder %s19, 1
      %p120 = por %p118, %p119
      %p121 = scmp.ne.s32.totalorder %s113, %s116
      %p122 = scmp.eq.s32.totalorder %s19, 0
      %p123 = por %p121, %p122
      %p124 = scmp.ne.s32.totalorder %s113, %s116
      %p125 = scmp.eq.s32.totalorder %s24, 1
      %p126 = por %p124, %p125
      %p127 = scmp.ne.s32.totalorder %s116, %s117
      %p128 = scmp.eq.s32.totalorder %s24, 0
      %p129 = por %p127, %p128
      %p130 = scmp.ne.s32.totalorder %s116, %s117
      %p131 = scmp.eq.s32.totalorder %s25, 1
      %p132 = por %p130, %p131
      %p134 = scmp.ne.s32.totalorder %s117, %s133
      %p135 = scmp.eq.s32.totalorder %s25, 0
      %p136 = por %p134, %p135
      %s137 = ssub.s32 %s19, %s26
      %p138 = scmp.eq.s32.totalorder %s137, 0
      %s140 = sadd.s32 %s139, 1
      %s141 = scalar_select %p138, %s139, %s140
      %p144 = pneg %p138
      %p145 = scmp.eq.s32.totalorder %s19, 1
      %p146 = por %p144, %p145
      %p147 = scmp.ne.s32.totalorder %s139, %s142
      %p148 = scmp.eq.s32.totalorder %s19, 0
      %p149 = por %p147, %p148
      %p150 = scmp.ne.s32.totalorder %s139, %s142
      %p151 = scmp.eq.s32.totalorder %s24, 1
      %p152 = por %p150, %p151
      %p153 = scmp.ne.s32.totalorder %s142, %s143
      %p154 = scmp.eq.s32.totalorder %s24, 0
      %p155 = por %p153, %p154
      %p156 = scmp.ne.s32.totalorder %s142, %s143
      %p157 = scmp.eq.s32.totalorder %s25, 1
      %p158 = por %p156, %p157
      %p160 = scmp.ne.s32.totalorder %s143, %s159
      %p161 = scmp.eq.s32.totalorder %s25, 0
      %p162 = por %p160, %p161
      %s163 = ssub.s32 %s19, %s26
      %p164 = scmp.eq.s32.totalorder %s163, 0
      %s166 = sadd.s32 %s165, 1
      %s167 = scalar_select %p164, %s165, %s166
      %p170 = pneg %p164
      %p171 = scmp.eq.s32.totalorder %s19, 1
      %p172 = por %p170, %p171
      %p173 = scmp.ne.s32.totalorder %s165, %s168
      %p174 = scmp.eq.s32.totalorder %s19, 0
      %p175 = por %p173, %p174
      %p176 = scmp.ne.s32.totalorder %s165, %s168
      %p177 = scmp.eq.s32.totalorder %s24, 1
      %p178 = por %p176, %p177
      %p179 = scmp.ne.s32.totalorder %s168, %s169
      %p180 = scmp.eq.s32.totalorder %s24, 0
      %p181 = por %p179, %p180
      %p182 = scmp.ne.s32.totalorder %s168, %s169
      %p183 = scmp.eq.s32.totalorder %s25, 1
      %p184 = por %p182, %p183
      %p186 = scmp.ne.s32.totalorder %s169, %s185
      %p187 = scmp.eq.s32.totalorder %s25, 0
      %p188 = por %p186, %p187
      %p189 = scmp.le.s32.totalorder 1, %s19
      %p190 = scmp.lt.s32.totalorder %s19, 3
      %p191 = pnand %p189, %p190
      %p192 = pneg %p191
      // Predicated region
      $region9: #{tpu_custom_call.1} parent=5 // pred_check
        _
      $region10: #{tpu_custom_call.1} parent=5 // pred_check_branch
        %194 = sbr.rel (%p191) target = $region12
      $region11: #{tpu_custom_call.1} parent=5 // pred_region
        %s195 = ssub.s32 %s19, 1
        // Predicated region
        $region13: #{tpu_custom_call.1} parent=11 // pred_check
          %p196 = pneg %p40
        $region14: #{tpu_custom_call.1} parent=11 // pred_check_branch
          %198 = sbr.rel (%p196) target = $region16
        $region15: #{tpu_custom_call.1} parent=11 // pred_region
          %200 = vsyncadd [#allocation5], 0
          %s202 = sshll.u32 %s0, 4
          %s203 = int_to_ptr.hbm [resolvable:$true] %s202
          %205 = dma.hbm_to_smem %s203, 32, [#allocation2], [#allocation5]
        $region16: #{tpu_custom_call.1} parent=11 // pred_fallthru
          _
        // Predicated region
        $region17: #{tpu_custom_call.1} parent=11 // pred_check
          %p206 = pneg %p61
        $region18: #{tpu_custom_call.1} parent=11 // pred_check_branch
          %208 = sbr.rel (%p206) target = $region20
        $region19: #{tpu_custom_call.1} parent=11 // pred_region
          %210 = vsyncadd [#allocation7], 0
          %s212 = sshll.u32 %s1, 4
          %s213 = int_to_ptr.hbm [resolvable:$true] %s212
          %215 = dma.hbm_to_smem %s213, 32, [#allocation6], [#allocation7]
        $region20: #{tpu_custom_call.1} parent=11 // pred_fallthru
          _
        // Predicated region
        $region21: #{tpu_custom_call.1} parent=11 // pred_check
          %p216 = pneg %p82
        $region22: #{tpu_custom_call.1} parent=11 // pred_check_branch
          %218 = sbr.rel (%p216) target = $region24
        $region23: #{tpu_custom_call.1} parent=11 // pred_region
          %220 = vsyncadd [#allocation3], 0
          %s221 = sshll.u32 %s2, 4
          %s222 = int_to_ptr.hbm [resolvable:$true] %s221
          %s223 = sshll.u32 [#allocation8], 4
          %s224 = int_to_ptr.vmem [resolvable:$true] %s223
          %229 = dma.hbm_to_vmem [thread:$0]  %s222, 512, %s224, [#allocation3], 128, 128, 8
        $region24: #{tpu_custom_call.1} parent=11 // pred_fallthru
          _
        // Predicated region
        $region25: #{tpu_custom_call.1} parent=11 // pred_check
          %p230 = pneg %p103
        $region26: #{tpu_custom_call.1} parent=11 // pred_check_branch
          %232 = sbr.rel (%p230) target = $region28
        $region27: #{tpu_custom_call.1} parent=11 // pred_region
          %234 = vsyncadd [#allocation10], 0
          %s235 = sshll.u32 %s3, 4
          %s236 = int_to_ptr.hbm [resolvable:$true] %s235
          %s237 = sshll.u32 [#allocation9], 4
          %s238 = int_to_ptr.vmem [resolvable:$true] %s237
          %243 = dma.hbm_to_vmem [thread:$0]  %s236, 512, %s238, [#allocation10], 128, 128, 8
        $region28: #{tpu_custom_call.1} parent=11 // pred_fallthru
          _
      $region12: #{tpu_custom_call.1} parent=5 // pred_fallthru
        _
      %p244 = scmp.lt.s32.totalorder %s19, 2
      // Predicated region
      $region29: #{tpu_custom_call.1} parent=5 // pred_check
        %p245 = pneg %p244
      $region30: #{tpu_custom_call.1} parent=5 // pred_check_branch
        %247 = sbr.rel (%p245) target = $region32
      $region31: #{tpu_custom_call.1} parent=5 // pred_region
        // Predicated region
        $region33: #{tpu_custom_call.1} parent=31 // pred_check
          %p248 = pneg %p123
        $region34: #{tpu_custom_call.1} parent=31 // pred_check_branch
          %250 = sbr.rel (%p248) target = $region36
        $region35: #{tpu_custom_call.1} parent=31 // pred_region
          %s251 = sand.u32 %s19, 1
          %s252 = scalar_lea.sflag [#allocation3], %s251
          %s253 = sand.u32 %s113, 1
          %s254 = smul.addr %s253, 32
          %s255 = scalar_lea.vmem [#allocation11], %s254
          %257 = vsyncadd %s252, 0
          %s258 = smul.addr %s19, 4
          %s259 = smul.addr %s258, 8
          %s260 = scalar_lea.hbm %s4, %s259
          %s261 = sshll.u32 %s260, 4
          %s262 = int_to_ptr.hbm [resolvable:$true] %s261
          %s263 = sshll.u32 %s255, 4
          %s264 = int_to_ptr.vmem [resolvable:$true] %s263
          %269 = dma.hbm_to_vmem [thread:$0]  %s262, 512, %s264, %s252, 128, 128, 8
        $region36: #{tpu_custom_call.1} parent=31 // pred_fallthru
          _
        // Predicated region
        $region37: #{tpu_custom_call.1} parent=31 // pred_check
          %p270 = pneg %p149
        $region38: #{tpu_custom_call.1} parent=31 // pred_check_branch
          %272 = sbr.rel (%p270) target = $region40
        $region39: #{tpu_custom_call.1} parent=31 // pred_region
          %s273 = sand.u32 %s19, 1
          %s274 = scalar_lea.sflag [#allocation3], %s273
          %s275 = sand.u32 %s139, 1
          %s276 = smul.addr %s275, 64
          %s277 = scalar_lea.vmem [#allocation12], %s276
          %279 = vsyncadd %s274, 0
          %s280 = smul.addr %s19, 8
          %s281 = smul.addr %s280, 8
          %s282 = scalar_lea.hbm %s5, %s281
          %s283 = sshll.u32 %s282, 4
          %s284 = int_to_ptr.hbm [resolvable:$true] %s283
          %s285 = sshll.u32 %s277, 4
          %s286 = int_to_ptr.vmem [resolvable:$true] %s285
          %291 = dma.hbm_to_vmem [thread:$0]  %s284, 1024, %s286, %s274, 128, 128, 8
        $region40: #{tpu_custom_call.1} parent=31 // pred_fallthru
          _
      $region32: #{tpu_custom_call.1} parent=5 // pred_fallthru
        _
      %p292 = scmp.le.s32.totalorder 1, %s19
      %p293 = scmp.lt.s32.totalorder %s19, 3
      %p294 = pnand %p292, %p293
      %p295 = pneg %p294
      // Predicated region
      $region41: #{tpu_custom_call.1} parent=5 // pred_check
        _
      $region42: #{tpu_custom_call.1} parent=5 // pred_check_branch
        %297 = sbr.rel (%p294) target = $region44
      $region43: #{tpu_custom_call.1} parent=5 // pred_region
        %s298 = ssub.s32 %s19, 1
        // Predicated region
        $region45: #{tpu_custom_call.1} parent=43 // pred_check
          %p299 = pneg %p40
        $region46: #{tpu_custom_call.1} parent=43 // pred_check_branch
          %301 = sbr.rel (%p299) target = $region48
        $region47: #{tpu_custom_call.1} parent=43 // pred_region
          %303 = dma.done [#allocation5], 32
        $region48: #{tpu_custom_call.1} parent=43 // pred_fallthru
          _
        // Predicated region
        $region49: #{tpu_custom_call.1} parent=43 // pred_check
          %p304 = pneg %p61
        $region50: #{tpu_custom_call.1} parent=43 // pred_check_branch
          %306 = sbr.rel (%p304) target = $region52
        $region51: #{tpu_custom_call.1} parent=43 // pred_region
          %308 = dma.done [#allocation7], 32
        $region52: #{tpu_custom_call.1} parent=43 // pred_fallthru
          _
        // Predicated region
        $region53: #{tpu_custom_call.1} parent=43 // pred_check
          %p309 = pneg %p82
        $region54: #{tpu_custom_call.1} parent=43 // pred_check_branch
          %311 = sbr.rel (%p309) target = $region56
        $region55: #{tpu_custom_call.1} parent=43 // pred_region
          %313 = dma.done [#allocation3], 512
        $region56: #{tpu_custom_call.1} parent=43 // pred_fallthru
          _
        // Predicated region
        $region57: #{tpu_custom_call.1} parent=43 // pred_check
          %p314 = pneg %p103
        $region58: #{tpu_custom_call.1} parent=43 // pred_check_branch
          %316 = sbr.rel (%p314) target = $region60
        $region59: #{tpu_custom_call.1} parent=43 // pred_region
          %318 = dma.done [#allocation10], 512
        $region60: #{tpu_custom_call.1} parent=43 // pred_fallthru
          _
        %s319 = sand.u32 %s24, 1
        %s320 = scalar_lea.sflag [#allocation3], %s319
        %s321 = sand.u32 %s116, 1
        %s322 = smul.addr %s321, 32
        %s323 = scalar_lea.vmem [#allocation11], %s322
        // Predicated region
        $region61: #{tpu_custom_call.1} parent=43 // pred_check
          %p324 = pneg %p129
        $region62: #{tpu_custom_call.1} parent=43 // pred_check_branch
          %326 = sbr.rel (%p324) target = $region64
        $region63: #{tpu_custom_call.1} parent=43 // pred_region
          %328 = dma.done %s320, 512
        $region64: #{tpu_custom_call.1} parent=43 // pred_fallthru
          _
        %s329 = sand.u32 %s24, 1
        %s330 = scalar_lea.sflag [#allocation3], %s329
        %s331 = sand.u32 %s142, 1
        %s332 = smul.addr %s331, 64
        %s333 = scalar_lea.vmem [#allocation12], %s332
        // Predicated region
        $region65: #{tpu_custom_call.1} parent=43 // pred_check
          %p334 = pneg %p155
        $region66: #{tpu_custom_call.1} parent=43 // pred_check_branch
          %336 = sbr.rel (%p334) target = $region68
        $region67: #{tpu_custom_call.1} parent=43 // pred_region
          %338 = dma.done %s330, 1024
        $region68: #{tpu_custom_call.1} parent=43 // pred_fallthru
          _
        %339 = sfence
        %p340 = pneg %p40
        %p341 = pneg %p37
        %p342 = pneg %p61
        %p343 = pneg %p58
        %p344 = pneg %p82
        %p345 = pneg %p79
        %p346 = pneg %p103
        %p347 = pneg %p100
        %s348 = sand.u32 %s24, 1
        %s349 = scalar_lea.sflag [#allocation3], %s348
        %s350 = sand.u32 %s116, 1
        %s351 = smul.addr %s350, 32
        %s352 = scalar_lea.vmem [#allocation11], %s351
        %p353 = pneg %p129
        %p354 = pneg %p126
        %s355 = sand.u32 %s24, 1
        %s356 = scalar_lea.sflag [#allocation3], %s355
        %s357 = sand.u32 %s142, 1
        %s358 = smul.addr %s357, 64
        %s359 = scalar_lea.vmem [#allocation12], %s358
        %p360 = pneg %p155
        %p361 = pneg %p152
        %p362 = pneg %p181
        %p363 = pneg %p178
        %s364 = sand.u32 %s168, 1
        %s365 = scalar_lea.sflag [#allocation4], %s364
        %s366 = sand.u32 %s168, 1
        %s367 = smul.addr %s366, 32
        %s368 = scalar_lea.vmem [#allocation13], %s367
        %v369 = vld [vmem:[#allocation8] sm:$0xff]
        %s370 = scalar_lea.vmem [#allocation8], 8
        %v371 = vld [vmem:[%s370] sm:$0xff]
        %s372 = scalar_lea.vmem [#allocation8], 16
        %v373 = vld [vmem:[%s372] sm:$0xff]
        %s374 = scalar_lea.vmem [#allocation8], 24
        %v375 = vld [vmem:[%s374] sm:$0xff]
        %v376 = vsub.f32 %v373, %v369
        %v377 = vsub.f32 %v375, %v371
        %v378 = vmul.f32 %v376, %v377
        %v379 = vlaneseq
        %v380 = vshrl.u32 %v379, 7
        %v381 = vmul.u32 %v380, 128
        %v382 = vlaneseq
        %v383 = vand.u32 %v382, 127
        %v384 = vadd.s32 %v381, %v383
        %s385 = smul.u32 %s24, 128
        %s386 = sld [smem:[#allocation2 + %s385]]
        %s387 = sadd.s32 %s385, 1
        %s388 = sld [smem:[#allocation2 + %s387]]
        %s389 = sadd.s32 %s385, 2
        %s390 = sld [smem:[#allocation2 + %s389]]
        %s391 = sadd.s32 %s385, 3
        %s392 = sld [smem:[#allocation2 + %s391]]
        %s393 = sld [smem:[#allocation6 + %s385]]
        %v394 = vstv %s390
        %v395 = vmin.f32 %v373, %v394
        %v396 = vstv %s386
        %v397 = vmax.f32 %v369, %v396
        %v398 = vsub.f32 %v395, %v397
        %v399 = vmax.f32 %v398, 0.0
        %v400 = vstv %s392
        %v401 = vmin.f32 %v375, %v400
        %v402 = vstv %s388
        %v403 = vmax.f32 %v371, %v402
        %v404 = vsub.f32 %v401, %v403
        %v405 = vmax.f32 %v404, 0.0
        %v406 = vmul.f32 %v399, %v405
        %s407 = ssub.f32 %s390, %s386
        %s408 = ssub.f32 %s392, %s388
        %s409 = smul.f32 %s407, %s408
        %v410 = vstv %s409
        %v411 = vadd.f32 %v410, %v378
        %v412 = vsub.f32 %v411, %v406
        %v413 = vrcp.pop %v412
        %v414 = vmul.f32 %v412, %v413
        %v415 = vsub.f32 1.0, %v414
        %v416 = vmul.f32 %v413, %v415
        %v417 = vadd.f32 %v413, %v416
        %vm418 = vweird.f32 %v412
        %vm419 = vweird.f32 %v413
        %vm420 = vmor %vm418, %vm419
        %v421 = vsel %vm420, %v413, %v417
        %v422 = vand.u32 2147483647, %v412
        %vm423 = vcmp.eq.f32.partialorder %v422, 8.507059e+37
        %v424 = vand.u32 %v412, 2147483648
        %v425 = vor.u32 1.1754944e-38, %v424
        %v426 = vsel %vm423, %v425, %v421
        %v427 = vmul.f32 %v406, %v426
        %vm428 = vcmp.gt.f32.partialorder %v427, -1.0
        %v429 = vsel %vm428, %v427, -1.0
        %v430 = vstv %s393
        %v431 = vsel %vm428, %v430, 0
        %v432 = vsel %vm428, %v396, 0.0
        %v433 = vsel %vm428, %v402, 0.0
        %v434 = vsel %vm428, %v394, 0.0
        %v435 = vsel %vm428, %v400, 0.0
        %436 = vmax.xlane.f32.xlu0 %v427
        %v437 = vpop.xlane.xlu0 %436
        %v438 = vrot.slane %v437, 4
        %v439 = vmax.f32 %v437, %v438
        %v440 = vrot.slane %v439, 2
        %v441 = vmax.f32 %v439, %v440
        %v442 = vrot.slane %v441, 1
        %v443 = vmax.f32 %v441, %v442
        %s444 = vtos %v443
        %v445 = vstv %s444
        %vm446 = vcmp.eq.f32.partialorder %v427, %v445
        %v447 = vsel %vm446, %v384, 1024
        %v448 = vand.u32 %v447, 65535
        %v449 = vshra.s32 %v447, 16
        %v450 = vcvt.s32.f32 %v448
        %v451 = vcvt.s32.f32 %v449
        %452 = vmin.xlane.f32.xlu0 %v451
        %v453 = vpop.xlane.xlu0 %452
        %vm454 = vcmp.eq.f32.partialorder %v451, %v453
        %v455 = vsel %vm454, %v450, inf
        %456 = vmin.xlane.f32.xlu0 %v455
        %v457 = vpop.xlane.xlu0 %456
        %v458 = vcvt.f32.s32 %v457
        %v459 = vcvt.f32.s32 %v453
        %v460 = vshll.u32 %v459, 16
        %v461 = vadd.s32 %v460, %v458
        %v462 = vrot.slane %v461, 4
        %vm463 = vcmp.lt.s32.totalorder %v461, %v462
        %v464 = vsel %vm463, %v461, %v462
        %v465 = vrot.slane %v464, 2
        %vm466 = vcmp.lt.s32.totalorder %v464, %v465
        %v467 = vsel %vm466, %v464, %v465
        %v468 = vrot.slane %v467, 1
        %vm469 = vcmp.lt.s32.totalorder %v467, %v468
        %v470 = vsel %vm469, %v467, %v468
        %s471 = vtos %v470
        %p472 = scmp.gt.f32.partialorder %s444, 0.0
        %v473 = vstv %s471
        %vm474 = vcmp.eq.s32.totalorder %v384, %v473
        %s475 = scalar_select %p472, 1, 0
        %v476 = vstv %s475
        %vm477 = vcmp.eq.s32.totalorder %v476, 1
        %vm478 = vmand %vm474, %vm477
        %v479 = vsel %vm478, 1.0, %v429
        %v480 = vsel %vm478, %v430, %v431
        %v481 = vsel %vm478, %v396, %v432
        %v482 = vsel %vm478, %v402, %v433
        %v483 = vsel %vm478, %v394, %v434
        %v484 = vsel %vm478, %v400, %v435
        %s485 = sadd.s32 %s385, 4
        %s486 = sld [smem:[#allocation2 + %s485]]
        %s487 = sadd.s32 %s385, 5
        %s488 = sld [smem:[#allocation2 + %s487]]
        %s489 = sadd.s32 %s385, 6
        %s490 = sld [smem:[#allocation2 + %s489]]
        %s491 = sadd.s32 %s385, 7
        %s492 = sld [smem:[#allocation2 + %s491]]
        %s493 = sld [smem:[#allocation6 + %s387]]
        %v494 = vstv %s490
        %v495 = vmin.f32 %v373, %v494
        %v496 = vstv %s486
        %v497 = vmax.f32 %v369, %v496
        %v498 = vsub.f32 %v495, %v497
        %v499 = vmax.f32 %v498, 0.0
        %v500 = vstv %s492
        %v501 = vmin.f32 %v375, %v500
        %v502 = vstv %s488
        %v503 = vmax.f32 %v371, %v502
        %v504 = vsub.f32 %v501, %v503
        %v505 = vmax.f32 %v504, 0.0
        %v506 = vmul.f32 %v499, %v505
        %s507 = ssub.f32 %s490, %s486
        %s508 = ssub.f32 %s492, %s488
        %s509 = smul.f32 %s507, %s508
        %v510 = vstv %s509
        %v511 = vadd.f32 %v510, %v378
        %v512 = vsub.f32 %v511, %v506
        %v513 = vrcp.pop %v512
        %v514 = vmul.f32 %v512, %v513
        %v515 = vsub.f32 1.0, %v514
        %v516 = vmul.f32 %v513, %v515
        %v517 = vadd.f32 %v513, %v516
        %vm518 = vweird.f32 %v512
        %vm519 = vweird.f32 %v513
        %vm520 = vmor %vm518, %vm519
        %v521 = vsel %vm520, %v513, %v517
        %v522 = vand.u32 2147483647, %v512
        %vm523 = vcmp.eq.f32.partialorder %v522, 8.507059e+37
        %v524 = vand.u32 %v512, 2147483648
        %v525 = vor.u32 1.1754944e-38, %v524
        %v526 = vsel %vm523, %v525, %v521
        %v527 = vmul.f32 %v506, %v526
        %vm528 = vcmp.gt.f32.partialorder %v527, %v479
        %v529 = vsel %vm528, %v527, %v479
        %v530 = vstv %s493
        %v531 = vsel %vm528, %v530, %v480
        %v532 = vsel %vm528, %v496, %v481
        %v533 = vsel %vm528, %v502, %v482
        %v534 = vsel %vm528, %v494, %v483
        %v535 = vsel %vm528, %v500, %v484
        %536 = vmax.xlane.f32.xlu0 %v527
        %v537 = vpop.xlane.xlu0 %536
        %v538 = vrot.slane %v537, 4
        %v539 = vmax.f32 %v537, %v538
        %v540 = vrot.slane %v539, 2
        %v541 = vmax.f32 %v539, %v540
        %v542 = vrot.slane %v541, 1
        %v543 = vmax.f32 %v541, %v542
        %s544 = vtos %v543
        %v545 = vstv %s544
        %vm546 = vcmp.eq.f32.partialorder %v527, %v545
        %v547 = vsel %vm546, %v384, 1024
        %v548 = vand.u32 %v547, 65535
        %v549 = vshra.s32 %v547, 16
        %v550 = vcvt.s32.f32 %v548
        %v551 = vcvt.s32.f32 %v549
        %552 = vmin.xlane.f32.xlu0 %v551
        %v553 = vpop.xlane.xlu0 %552
        %vm554 = vcmp.eq.f32.partialorder %v551, %v553
        %v555 = vsel %vm554, %v550, inf
        %556 = vmin.xlane.f32.xlu0 %v555
        %v557 = vpop.xlane.xlu0 %556
        %v558 = vcvt.f32.s32 %v557
        %v559 = vcvt.f32.s32 %v553
        %v560 = vshll.u32 %v559, 16
        %v561 = vadd.s32 %v560, %v558
        %v562 = vrot.slane %v561, 4
        %vm563 = vcmp.lt.s32.totalorder %v561, %v562
        %v564 = vsel %vm563, %v561, %v562
        %v565 = vrot.slane %v564, 2
        %vm566 = vcmp.lt.s32.totalorder %v564, %v565
        %v567 = vsel %vm566, %v564, %v565
        %v568 = vrot.slane %v567, 1
        %vm569 = vcmp.lt.s32.totalorder %v567, %v568
        %v570 = vsel %vm569, %v567, %v568
        %s571 = vtos %v570
        %p572 = scmp.gt.f32.partialorder %s544, 0.0
        %v573 = vstv %s571
        %vm574 = vcmp.eq.s32.totalorder %v384, %v573
        %s575 = scalar_select %p572, 1, 0
        %v576 = vstv %s575
        %vm577 = vcmp.eq.s32.totalorder %v576, 1
        %vm578 = vmand %vm574, %vm577
        %v579 = vsel %vm578, 1.0, %v529
        %s580 = sshra.s32 %s475, 7
        %s581 = sand.u32 %s475, 127
        %s582 = sadd.s32 %s580, %s24
        %s583 = smul.u32 %s582, 128
        %s584 = sshra.s32 %s475, 7
        %s585 = sand.u32 %s475, 127
        %s586 = sadd.s32 %s583, %s585
        %s587 = sld [smem:[#allocation6 + %s586]]
        %v588 = vstv %s587
        %v589 = vsel %vm578, %v588, %v531
        %s590 = smul.u32 %s475, 4
        %s591 = sshra.s32 %s590, 7
        %s592 = sand.u32 %s590, 127
        %s593 = sadd.s32 %s591, %s24
        %s594 = smul.u32 %s593, 128
        %s595 = sshra.s32 %s590, 7
        %s596 = sand.u32 %s590, 127
        %s597 = sadd.s32 %s594, %s596
        %s598 = sld [smem:[#allocation2 + %s597]]
        %v599 = vstv %s598
        %v600 = vsel %vm578, %v599, %v532
        %s601 = sadd.s32 %s590, 1
        %s602 = sshra.s32 %s601, 7
        %s603 = sand.u32 %s601, 127
        %s604 = sadd.s32 %s602, %s24
        %s605 = smul.u32 %s604, 128
        %s606 = sshra.s32 %s601, 7
        %s607 = sand.u32 %s601, 127
        %s608 = sadd.s32 %s605, %s607
        %s609 = sld [smem:[#allocation2 + %s608]]
        %v610 = vstv %s609
        %v611 = vsel %vm578, %v610, %v533
        %s612 = sadd.s32 %s590, 2
        %s613 = sshra.s32 %s612, 7
        %s614 = sand.u32 %s612, 127
        %s615 = sadd.s32 %s613, %s24
        %s616 = smul.u32 %s615, 128
        %s617 = sshra.s32 %s612, 7
        %s618 = sand.u32 %s612, 127
        %s619 = sadd.s32 %s616, %s618
        %s620 = sld [smem:[#allocation2 + %s619]]
        %v621 = vstv %s620
        %v622 = vsel %vm578, %v621, %v534
        %s623 = sadd.s32 %s590, 3
        %s624 = sshra.s32 %s623, 7
        %s625 = sand.u32 %s623, 127
        %s626 = sadd.s32 %s624, %s24
        %s627 = smul.u32 %s626, 128
        %s628 = sshra.s32 %s623, 7
        %s629 = sand.u32 %s623, 127
        %s630 = sadd.s32 %s627, %s629
        %s631 = sld [smem:[#allocation2 + %s630]]
        %v632 = vstv %s631
        %v633 = vsel %vm578, %v632, %v535
        %s634 = sadd.s32 %s475, %s575
        %s635 = sadd.s32 %s385, 8
        %s636 = sld [smem:[#allocation2 + %s635]]
        %s637 = sadd.s32 %s385, 9
        %s638 = sld [smem:[#allocation2 + %s637]]
        %s639 = sadd.s32 %s385, 10
        %s640 = sld [smem:[#allocation2 + %s639]]
        %s641 = sadd.s32 %s385, 11
        %s642 = sld [smem:[#allocation2 + %s641]]
        %s643 = sld [smem:[#allocation6 + %s389]]
        %v644 = vstv %s640
        %v645 = vmin.f32 %v373, %v644
        %v646 = vstv %s636
        %v647 = vmax.f32 %v369, %v646
        %v648 = vsub.f32 %v645, %v647
        %v649 = vmax.f32 %v648, 0.0
        %v650 = vstv %s642
        %v651 = vmin.f32 %v375, %v650
        %v652 = vstv %s638
        %v653 = vmax.f32 %v371, %v652
        %v654 = vsub.f32 %v651, %v653
        %v655 = vmax.f32 %v654, 0.0
        %v656 = vmul.f32 %v649, %v655
        %s657 = ssub.f32 %s640, %s636
        %s658 = ssub.f32 %s642, %s638
        %s659 = smul.f32 %s657, %s658
        %v660 = vstv %s659
        %v661 = vadd.f32 %v660, %v378
        %v662 = vsub.f32 %v661, %v656
        %v663 = vrcp.pop %v662
        %v664 = vmul.f32 %v662, %v663
        %v665 = vsub.f32 1.0, %v664
        %v666 = vmul.f32 %v663, %v665
        %v667 = vadd.f32 %v663, %v666
        %vm668 = vweird.f32 %v662
        %vm669 = vweird.f32 %v663
        %vm670 = vmor %vm668, %vm669
        %v671 = vsel %vm670, %v663, %v667
        %v672 = vand.u32 2147483647, %v662
        %vm673 = vcmp.eq.f32.partialorder %v672, 8.507059e+37
        %v674 = vand.u32 %v662, 2147483648
        %v675 = vor.u32 1.1754944e-38, %v674
        %v676 = vsel %vm673, %v675, %v671
        %v677 = vmul.f32 %v656, %v676
        %vm678 = vcmp.gt.f32.partialorder %v677, %v579
        %v679 = vsel %vm678, %v677, %v579
        %v680 = vstv %s643
        %v681 = vsel %vm678, %v680, %v589
        %v682 = vsel %vm678, %v646, %v600
        %v683 = vsel %vm678, %v652, %v611
        %v684 = vsel %vm678, %v644, %v622
        %v685 = vsel %vm678, %v650, %v633
        %686 = vmax.xlane.f32.xlu0 %v677
        %v687 = vpop.xlane.xlu0 %686
        %v688 = vrot.slane %v687, 4
        %v689 = vmax.f32 %v687, %v688
        %v690 = vrot.slane %v689, 2
        %v691 = vmax.f32 %v689, %v690
        %v692 = vrot.slane %v691, 1
        %v693 = vmax.f32 %v691, %v692
        %s694 = vtos %v693
        %v695 = vstv %s694
        %vm696 = vcmp.eq.f32.partialorder %v677, %v695
        %v697 = vsel %vm696, %v384, 1024
        %v698 = vand.u32 %v697, 65535
        %v699 = vshra.s32 %v697, 16
        %v700 = vcvt.s32.f32 %v698
        %v701 = vcvt.s32.f32 %v699
        %702 = vmin.xlane.f32.xlu0 %v701
        %v703 = vpop.xlane.xlu0 %702
        %vm704 = vcmp.eq.f32.partialorder %v701, %v703
        %v705 = vsel %vm704, %v700, inf
        %706 = vmin.xlane.f32.xlu0 %v705
        %v707 = vpop.xlane.xlu0 %706
        %v708 = vcvt.f32.s32 %v707
        %v709 = vcvt.f32.s32 %v703
        %v710 = vshll.u32 %v709, 16
        %v711 = vadd.s32 %v710, %v708
        %v712 = vrot.slane %v711, 4
        %vm713 = vcmp.lt.s32.totalorder %v711, %v712
        %v714 = vsel %vm713, %v711, %v712
        %v715 = vrot.slane %v714, 2
        %vm716 = vcmp.lt.s32.totalorder %v714, %v715
        %v717 = vsel %vm716, %v714, %v715
        %v718 = vrot.slane %v717, 1
        %vm719 = vcmp.lt.s32.totalorder %v717, %v718
        %v720 = vsel %vm719, %v717, %v718
        %s721 = vtos %v720
        %p722 = scmp.gt.f32.partialorder %s694, 0.0
        %v723 = vstv %s721
        %vm724 = vcmp.eq.s32.totalorder %v384, %v723
        %s725 = scalar_select %p722, 1, 0
        %v726 = vstv %s725
        %vm727 = vcmp.eq.s32.totalorder %v726, 1
        %vm728 = vmand %vm724, %vm727
        %v729 = vsel %vm728, 1.0, %v679
        %s730 = sshra.s32 %s634, 7
        %s731 = sand.u32 %s634, 127
        %s732 = sadd.s32 %s730, %s24
        %s733 = smul.u32 %s732, 128
        %s734 = sshra.s32 %s634, 7
        %s735 = sand.u32 %s634, 127
        %s736 = sadd.s32 %s733, %s735
        %s737 = sld [smem:[#allocation6 + %s736]]
        %v738 = vstv %s737
        %v739 = vsel %vm728, %v738, %v681
        %s740 = smul.u32 %s634, 4
        %s741 = sshra.s32 %s740, 7
        %s742 = sand.u32 %s740, 127
        %s743 = sadd.s32 %s741, %s24
        %s744 = smul.u32 %s743, 128
        %s745 = sshra.s32 %s740, 7
        %s746 = sand.u32 %s740, 127
        %s747 = sadd.s32 %s744, %s746
        %s748 = sld [smem:[#allocation2 + %s747]]
        %v749 = vstv %s748
        %v750 = vsel %vm728, %v749, %v682
        %s751 = sadd.s32 %s740, 1
        %s752 = sshra.s32 %s751, 7
        %s753 = sand.u32 %s751, 127
        %s754 = sadd.s32 %s752, %s24
        %s755 = smul.u32 %s754, 128
        %s756 = sshra.s32 %s751, 7
        %s757 = sand.u32 %s751, 127
        %s758 = sadd.s32 %s755, %s757
        %s759 = sld [smem:[#allocation2 + %s758]]
        %v760 = vstv %s759
        %v761 = vsel %vm728, %v760, %v683
        %s762 = sadd.s32 %s740, 2
        %s763 = sshra.s32 %s762, 7
        %s764 = sand.u32 %s762, 127
        %s765 = sadd.s32 %s763, %s24
        %s766 = smul.u32 %s765, 128
        %s767 = sshra.s32 %s762, 7
        %s768 = sand.u32 %s762, 127
        %s769 = sadd.s32 %s766, %s768
        %s770 = sld [smem:[#allocation2 + %s769]]
        %v771 = vstv %s770
        %v772 = vsel %vm728, %v771, %v684
        %s773 = sadd.s32 %s740, 3
        %s774 = sshra.s32 %s773, 7
        %s775 = sand.u32 %s773, 127
        %s776 = sadd.s32 %s774, %s24
        %s777 = smul.u32 %s776, 128
        %s778 = sshra.s32 %s773, 7
        %s779 = sand.u32 %s773, 127
        %s780 = sadd.s32 %s777, %s779
        %s781 = sld [smem:[#allocation2 + %s780]]
        %v782 = vstv %s781
        %v783 = vsel %vm728, %v782, %v685
        %s784 = sadd.s32 %s634, %s725
        %s785 = sadd.s32 %s385, 12
        %s786 = sld [smem:[#allocation2 + %s785]]
        %s787 = sadd.s32 %s385, 13
        %s788 = sld [smem:[#allocation2 + %s787]]
        %s789 = sadd.s32 %s385, 14
        %s790 = sld [smem:[#allocation2 + %s789]]
        %s791 = sadd.s32 %s385, 15
        %s792 = sld [smem:[#allocation2 + %s791]]
        %s793 = sld [smem:[#allocation6 + %s391]]
        %v794 = vstv %s790
        %v795 = vmin.f32 %v373, %v794
        %v796 = vstv %s786
        %v797 = vmax.f32 %v369, %v796
        %v798 = vsub.f32 %v795, %v797
        %v799 = vmax.f32 %v798, 0.0
        %v800 = vstv %s792
        %v801 = vmin.f32 %v375, %v800
        %v802 = vstv %s788
        %v803 = vmax.f32 %v371, %v802
        %v804 = vsub.f32 %v801, %v803
        %v805 = vmax.f32 %v804, 0.0
        %v806 = vmul.f32 %v799, %v805
        %s807 = ssub.f32 %s790, %s786
        %s808 = ssub.f32 %s792, %s788
        %s809 = smul.f32 %s807, %s808
        %v810 = vstv %s809
        %v811 = vadd.f32 %v810, %v378
        %v812 = vsub.f32 %v811, %v806
        %v813 = vrcp.pop %v812
        %v814 = vmul.f32 %v812, %v813
        %v815 = vsub.f32 1.0, %v814
        %v816 = vmul.f32 %v813, %v815
        %v817 = vadd.f32 %v813, %v816
        %vm818 = vweird.f32 %v812
        %vm819 = vweird.f32 %v813
        %vm820 = vmor %vm818, %vm819
        %v821 = vsel %vm820, %v813, %v817
        %v822 = vand.u32 2147483647, %v812
        %vm823 = vcmp.eq.f32.partialorder %v822, 8.507059e+37
        %v824 = vand.u32 %v812, 2147483648
        %v825 = vor.u32 1.1754944e-38, %v824
        %v826 = vsel %vm823, %v825, %v821
        %v827 = vmul.f32 %v806, %v826
        %vm828 = vcmp.gt.f32.partialorder %v827, %v729
        %v829 = vsel %vm828, %v827, %v729
        %v830 = vstv %s793
        %v831 = vsel %vm828, %v830, %v739
        %v832 = vsel %vm828, %v796, %v750
        %v833 = vsel %vm828, %v802, %v761
        %v834 = vsel %vm828, %v794, %v772
        %v835 = vsel %vm828, %v800, %v783
        %836 = vmax.xlane.f32.xlu0 %v827
        %v837 = vpop.xlane.xlu0 %836
        %v838 = vrot.slane %v837, 4
        %v839 = vmax.f32 %v837, %v838
        %v840 = vrot.slane %v839, 2
        %v841 = vmax.f32 %v839, %v840
        %v842 = vrot.slane %v841, 1
        %v843 = vmax.f32 %v841, %v842
        %s844 = vtos %v843
        %v845 = vstv %s844
        %vm846 = vcmp.eq.f32.partialorder %v827, %v845
        %v847 = vsel %vm846, %v384, 1024
        %v848 = vand.u32 %v847, 65535
        %v849 = vshra.s32 %v847, 16
        %v850 = vcvt.s32.f32 %v848
        %v851 = vcvt.s32.f32 %v849
        %852 = vmin.xlane.f32.xlu0 %v851
        %v853 = vpop.xlane.xlu0 %852
        %vm854 = vcmp.eq.f32.partialorder %v851, %v853
        %v855 = vsel %vm854, %v850, inf
        %856 = vmin.xlane.f32.xlu0 %v855
        %v857 = vpop.xlane.xlu0 %856
        %v858 = vcvt.f32.s32 %v857
        %v859 = vcvt.f32.s32 %v853
        %v860 = vshll.u32 %v859, 16
        %v861 = vadd.s32 %v860, %v858
        %v862 = vrot.slane %v861, 4
        %vm863 = vcmp.lt.s32.totalorder %v861, %v862
        %v864 = vsel %vm863, %v861, %v862
        %v865 = vrot.slane %v864, 2
        %vm866 = vcmp.lt.s32.totalorder %v864, %v865
        %v867 = vsel %vm866, %v864, %v865
        %v868 = vrot.slane %v867, 1
        %vm869 = vcmp.lt.s32.totalorder %v867, %v868
        %v870 = vsel %vm869, %v867, %v868
        %s871 = vtos %v870
        %p872 = scmp.gt.f32.partialorder %s844, 0.0
        %v873 = vstv %s871
        %vm874 = vcmp.eq.s32.totalorder %v384, %v873
        %s875 = scalar_select %p872, 1, 0
        %v876 = vstv %s875
        %vm877 = vcmp.eq.s32.totalorder %v876, 1
        %vm878 = vmand %vm874, %vm877
        %v879 = vsel %vm878, 1.0, %v829
        %s880 = sshra.s32 %s784, 7
        %s881 = sand.u32 %s784, 127
        %s882 = sadd.s32 %s880, %s24
        %s883 = smul.u32 %s882, 128
        %s884 = sshra.s32 %s784, 7
        %s885 = sand.u32 %s784, 127
        %s886 = sadd.s32 %s883, %s885
        %s887 = sld [smem:[#allocation6 + %s886]]
        %v888 = vstv %s887
        %v889 = vsel %vm878, %v888, %v831
        %s890 = smul.u32 %s784, 4
        %s891 = sshra.s32 %s890, 7
        %s892 = sand.u32 %s890, 127
        %s893 = sadd.s32 %s891, %s24
        %s894 = smul.u32 %s893, 128
        %s895 = sshra.s32 %s890, 7
        %s896 = sand.u32 %s890, 127
        %s897 = sadd.s32 %s894, %s896
        %s898 = sld [smem:[#allocation2 + %s897]]
        %v899 = vstv %s898
        %v900 = vsel %vm878, %v899, %v832
        %s901 = sadd.s32 %s890, 1
        %s902 = sshra.s32 %s901, 7
        %s903 = sand.u32 %s901, 127
        %s904 = sadd.s32 %s902, %s24
        %s905 = smul.u32 %s904, 128
        %s906 = sshra.s32 %s901, 7
        %s907 = sand.u32 %s901, 127
        %s908 = sadd.s32 %s905, %s907
        %s909 = sld [smem:[#allocation2 + %s908]]
        %v910 = vstv %s909
        %v911 = vsel %vm878, %v910, %v833
        %s912 = sadd.s32 %s890, 2
        %s913 = sshra.s32 %s912, 7
        %s914 = sand.u32 %s912, 127
        %s915 = sadd.s32 %s913, %s24
        %s916 = smul.u32 %s915, 128
        %s917 = sshra.s32 %s912, 7
        %s918 = sand.u32 %s912, 127
        %s919 = sadd.s32 %s916, %s918
        %s920 = sld [smem:[#allocation2 + %s919]]
        %v921 = vstv %s920
        %v922 = vsel %vm878, %v921, %v834
        %s923 = sadd.s32 %s890, 3
        %s924 = sshra.s32 %s923, 7
        %s925 = sand.u32 %s923, 127
        %s926 = sadd.s32 %s924, %s24
        %s927 = smul.u32 %s926, 128
        %s928 = sshra.s32 %s923, 7
        %s929 = sand.u32 %s923, 127
        %s930 = sadd.s32 %s927, %s929
        %s931 = sld [smem:[#allocation2 + %s930]]
        %v932 = vstv %s931
        %v933 = vsel %vm878, %v932, %v835
        %s934 = sadd.s32 %s784, %s875
        %s935 = sadd.s32 %s385, 16
        %s936 = sld [smem:[#allocation2 + %s935]]
        %s937 = sadd.s32 %s385, 17
        %s938 = sld [smem:[#allocation2 + %s937]]
        %s939 = sadd.s32 %s385, 18
        %s940 = sld [smem:[#allocation2 + %s939]]
        %s941 = sadd.s32 %s385, 19
        %s942 = sld [smem:[#allocation2 + %s941]]
        %s943 = sld [smem:[#allocation6 + %s485]]
        %v944 = vstv %s940
        %v945 = vmin.f32 %v373, %v944
        %v946 = vstv %s936
        %v947 = vmax.f32 %v369, %v946
        %v948 = vsub.f32 %v945, %v947
        %v949 = vmax.f32 %v948, 0.0
        %v950 = vstv %s942
        %v951 = vmin.f32 %v375, %v950
        %v952 = vstv %s938
        %v953 = vmax.f32 %v371, %v952
        %v954 = vsub.f32 %v951, %v953
        %v955 = vmax.f32 %v954, 0.0
        %v956 = vmul.f32 %v949, %v955
        %s957 = ssub.f32 %s940, %s936
        %s958 = ssub.f32 %s942, %s938
        %s959 = smul.f32 %s957, %s958
        %v960 = vstv %s959
        %v961 = vadd.f32 %v960, %v378
        %v962 = vsub.f32 %v961, %v956
        %v963 = vrcp.pop %v962
        %v964 = vmul.f32 %v962, %v963
        %v965 = vsub.f32 1.0, %v964
        %v966 = vmul.f32 %v963, %v965
        %v967 = vadd.f32 %v963, %v966
        %vm968 = vweird.f32 %v962
        %vm969 = vweird.f32 %v963
        %vm970 = vmor %vm968, %vm969
        %v971 = vsel %vm970, %v963, %v967
        %v972 = vand.u32 2147483647, %v962
        %vm973 = vcmp.eq.f32.partialorder %v972, 8.507059e+37
        %v974 = vand.u32 %v962, 2147483648
        %v975 = vor.u32 1.1754944e-38, %v974
        %v976 = vsel %vm973, %v975, %v971
        %v977 = vmul.f32 %v956, %v976
        %vm978 = vcmp.gt.f32.partialorder %v977, %v879
        %v979 = vsel %vm978, %v977, %v879
        %v980 = vstv %s943
        %v981 = vsel %vm978, %v980, %v889
        %v982 = vsel %vm978, %v946, %v900
        %v983 = vsel %vm978, %v952, %v911
        %v984 = vsel %vm978, %v944, %v922
        %v985 = vsel %vm978, %v950, %v933
        %986 = vmax.xlane.f32.xlu0 %v977
        %v987 = vpop.xlane.xlu0 %986
        %v988 = vrot.slane %v987, 4
        %v989 = vmax.f32 %v987, %v988
        %v990 = vrot.slane %v989, 2
        %v991 = vmax.f32 %v989, %v990
        %v992 = vrot.slane %v991, 1
        %v993 = vmax.f32 %v991, %v992
        %s994 = vtos %v993
        %v995 = vstv %s994
        %vm996 = vcmp.eq.f32.partialorder %v977, %v995
        %v997 = vsel %vm996, %v384, 1024
        %v998 = vand.u32 %v997, 65535
        %v999 = vshra.s32 %v997, 16
        %v1000 = vcvt.s32.f32 %v998
        %v1001 = vcvt.s32.f32 %v999
        %1002 = vmin.xlane.f32.xlu0 %v1001
        %v1003 = vpop.xlane.xlu0 %1002
        %vm1004 = vcmp.eq.f32.partialorder %v1001, %v1003
        %v1005 = vsel %vm1004, %v1000, inf
        %1006 = vmin.xlane.f32.xlu0 %v1005
        %v1007 = vpop.xlane.xlu0 %1006
        %v1008 = vcvt.f32.s32 %v1007
        %v1009 = vcvt.f32.s32 %v1003
        %v1010 = vshll.u32 %v1009, 16
        %v1011 = vadd.s32 %v1010, %v1008
        %v1012 = vrot.slane %v1011, 4
        %vm1013 = vcmp.lt.s32.totalorder %v1011, %v1012
        %v1014 = vsel %vm1013, %v1011, %v1012
        %v1015 = vrot.slane %v1014, 2
        %vm1016 = vcmp.lt.s32.totalorder %v1014, %v1015
        %v1017 = vsel %vm1016, %v1014, %v1015
        %v1018 = vrot.slane %v1017, 1
        %vm1019 = vcmp.lt.s32.totalorder %v1017, %v1018
        %v1020 = vsel %vm1019, %v1017, %v1018
        %s1021 = vtos %v1020
        %p1022 = scmp.gt.f32.partialorder %s994, 0.0
        %v1023 = vstv %s1021
        %vm1024 = vcmp.eq.s32.totalorder %v384, %v1023
        %s1025 = scalar_select %p1022, 1, 0
        %v1026 = vstv %s1025
        %vm1027 = vcmp.eq.s32.totalorder %v1026, 1
        %vm1028 = vmand %vm1024, %vm1027
        %v1029 = vsel %vm1028, 1.0, %v979
        %s1030 = sshra.s32 %s934, 7
        %s1031 = sand.u32 %s934, 127
        %s1032 = sadd.s32 %s1030, %s24
        %s1033 = smul.u32 %s1032, 128
        %s1034 = sshra.s32 %s934, 7
        %s1035 = sand.u32 %s934, 127
        %s1036 = sadd.s32 %s1033, %s1035
        %s1037 = sld [smem:[#allocation6 + %s1036]]
        %v1038 = vstv %s1037
        %v1039 = vsel %vm1028, %v1038, %v981
        %s1040 = smul.u32 %s934, 4
        %s1041 = sshra.s32 %s1040, 7
        %s1042 = sand.u32 %s1040, 127
        %s1043 = sadd.s32 %s1041, %s24
        %s1044 = smul.u32 %s1043, 128
        %s1045 = sshra.s32 %s1040, 7
        %s1046 = sand.u32 %s1040, 127
        %s1047 = sadd.s32 %s1044, %s1046
        %s1048 = sld [smem:[#allocation2 + %s1047]]
        %v1049 = vstv %s1048
        %v1050 = vsel %vm1028, %v1049, %v982
        %s1051 = sadd.s32 %s1040, 1
        %s1052 = sshra.s32 %s1051, 7
        %s1053 = sand.u32 %s1051, 127
        %s1054 = sadd.s32 %s1052, %s24
        %s1055 = smul.u32 %s1054, 128
        %s1056 = sshra.s32 %s1051, 7
        %s1057 = sand.u32 %s1051, 127
        %s1058 = sadd.s32 %s1055, %s1057
        %s1059 = sld [smem:[#allocation2 + %s1058]]
        %v1060 = vstv %s1059
        %v1061 = vsel %vm1028, %v1060, %v983
        %s1062 = sadd.s32 %s1040, 2
        %s1063 = sshra.s32 %s1062, 7
        %s1064 = sand.u32 %s1062, 127
        %s1065 = sadd.s32 %s1063, %s24
        %s1066 = smul.u32 %s1065, 128
        %s1067 = sshra.s32 %s1062, 7
        %s1068 = sand.u32 %s1062, 127
        %s1069 = sadd.s32 %s1066, %s1068
        %s1070 = sld [smem:[#allocation2 + %s1069]]
        %v1071 = vstv %s1070
        %v1072 = vsel %vm1028, %v1071, %v984
        %s1073 = sadd.s32 %s1040, 3
        %s1074 = sshra.s32 %s1073, 7
        %s1075 = sand.u32 %s1073, 127
        %s1076 = sadd.s32 %s1074, %s24
        %s1077 = smul.u32 %s1076, 128
        %s1078 = sshra.s32 %s1073, 7
        %s1079 = sand.u32 %s1073, 127
        %s1080 = sadd.s32 %s1077, %s1079
        %s1081 = sld [smem:[#allocation2 + %s1080]]
        %v1082 = vstv %s1081
        %v1083 = vsel %vm1028, %v1082, %v985
        %s1084 = sadd.s32 %s934, %s1025
        %s1085 = sadd.s32 %s385, 20
        %s1086 = sld [smem:[#allocation2 + %s1085]]
        %s1087 = sadd.s32 %s385, 21
        %s1088 = sld [smem:[#allocation2 + %s1087]]
        %s1089 = sadd.s32 %s385, 22
        %s1090 = sld [smem:[#allocation2 + %s1089]]
        %s1091 = sadd.s32 %s385, 23
        %s1092 = sld [smem:[#allocation2 + %s1091]]
        %s1093 = sld [smem:[#allocation6 + %s487]]
        %v1094 = vstv %s1090
        %v1095 = vmin.f32 %v373, %v1094
        %v1096 = vstv %s1086
        %v1097 = vmax.f32 %v369, %v1096
        %v1098 = vsub.f32 %v1095, %v1097
        %v1099 = vmax.f32 %v1098, 0.0
        %v1100 = vstv %s1092
        %v1101 = vmin.f32 %v375, %v1100
        %v1102 = vstv %s1088
        %v1103 = vmax.f32 %v371, %v1102
        %v1104 = vsub.f32 %v1101, %v1103
        %v1105 = vmax.f32 %v1104, 0.0
        %v1106 = vmul.f32 %v1099, %v1105
        %s1107 = ssub.f32 %s1090, %s1086
        %s1108 = ssub.f32 %s1092, %s1088
        %s1109 = smul.f32 %s1107, %s1108
        %v1110 = vstv %s1109
        %v1111 = vadd.f32 %v1110, %v378
        %v1112 = vsub.f32 %v1111, %v1106
        %v1113 = vrcp.pop %v1112
        %v1114 = vmul.f32 %v1112, %v1113
        %v1115 = vsub.f32 1.0, %v1114
        %v1116 = vmul.f32 %v1113, %v1115
        %v1117 = vadd.f32 %v1113, %v1116
        %vm1118 = vweird.f32 %v1112
        %vm1119 = vweird.f32 %v1113
        %vm1120 = vmor %vm1118, %vm1119
        %v1121 = vsel %vm1120, %v1113, %v1117
        %v1122 = vand.u32 2147483647, %v1112
        %vm1123 = vcmp.eq.f32.partialorder %v1122, 8.507059e+37
        %v1124 = vand.u32 %v1112, 2147483648
        %v1125 = vor.u32 1.1754944e-38, %v1124
        %v1126 = vsel %vm1123, %v1125, %v1121
        %v1127 = vmul.f32 %v1106, %v1126
        %vm1128 = vcmp.gt.f32.partialorder %v1127, %v1029
        %v1129 = vsel %vm1128, %v1127, %v1029
        %v1130 = vstv %s1093
        %v1131 = vsel %vm1128, %v1130, %v1039
        %v1132 = vsel %vm1128, %v1096, %v1050
        %v1133 = vsel %vm1128, %v1102, %v1061
        %v1134 = vsel %vm1128, %v1094, %v1072
        %v1135 = vsel %vm1128, %v1100, %v1083
        %1136 = vmax.xlane.f32.xlu0 %v1127
        %v1137 = vpop.xlane.xlu0 %1136
        %v1138 = vrot.slane %v1137, 4
        %v1139 = vmax.f32 %v1137, %v1138
        %v1140 = vrot.slane %v1139, 2
        %v1141 = vmax.f32 %v1139, %v1140
        %v1142 = vrot.slane %v1141, 1
        %v1143 = vmax.f32 %v1141, %v1142
        %s1144 = vtos %v1143
        %v1145 = vstv %s1144
        %vm1146 = vcmp.eq.f32.partialorder %v1127, %v1145
        %v1147 = vsel %vm1146, %v384, 1024
        %v1148 = vand.u32 %v1147, 65535
        %v1149 = vshra.s32 %v1147, 16
        %v1150 = vcvt.s32.f32 %v1148
        %v1151 = vcvt.s32.f32 %v1149
        %1152 = vmin.xlane.f32.xlu0 %v1151
        %v1153 = vpop.xlane.xlu0 %1152
        %vm1154 = vcmp.eq.f32.partialorder %v1151, %v1153
        %v1155 = vsel %vm1154, %v1150, inf
        %1156 = vmin.xlane.f32.xlu0 %v1155
        %v1157 = vpop.xlane.xlu0 %1156
        %v1158 = vcvt.f32.s32 %v1157
        %v1159 = vcvt.f32.s32 %v1153
        %v1160 = vshll.u32 %v1159, 16
        %v1161 = vadd.s32 %v1160, %v1158
        %v1162 = vrot.slane %v1161, 4
        %vm1163 = vcmp.lt.s32.totalorder %v1161, %v1162
        %v1164 = vsel %vm1163, %v1161, %v1162
        %v1165 = vrot.slane %v1164, 2
        %vm1166 = vcmp.lt.s32.totalorder %v1164, %v1165
        %v1167 = vsel %vm1166, %v1164, %v1165
        %v1168 = vrot.slane %v1167, 1
        %vm1169 = vcmp.lt.s32.totalorder %v1167, %v1168
        %v1170 = vsel %vm1169, %v1167, %v1168
        %s1171 = vtos %v1170
        %p1172 = scmp.gt.f32.partialorder %s1144, 0.0
        %v1173 = vstv %s1171
        %vm1174 = vcmp.eq.s32.totalorder %v384, %v1173
        %s1175 = scalar_select %p1172, 1, 0
        %v1176 = vstv %s1175
        %vm1177 = vcmp.eq.s32.totalorder %v1176, 1
        %vm1178 = vmand %vm1174, %vm1177
        %v1179 = vsel %vm1178, 1.0, %v1129
        %s1180 = sshra.s32 %s1084, 7
        %s1181 = sand.u32 %s1084, 127
        %s1182 = sadd.s32 %s1180, %s24
        %s1183 = smul.u32 %s1182, 128
        %s1184 = sshra.s32 %s1084, 7
        %s1185 = sand.u32 %s1084, 127
        %s1186 = sadd.s32 %s1183, %s1185
        %s1187 = sld [smem:[#allocation6 + %s1186]]
        %v1188 = vstv %s1187
        %v1189 = vsel %vm1178, %v1188, %v1131
        %s1190 = smul.u32 %s1084, 4
        %s1191 = sshra.s32 %s1190, 7
        %s1192 = sand.u32 %s1190, 127
        %s1193 = sadd.s32 %s1191, %s24
        %s1194 = smul.u32 %s1193, 128
        %s1195 = sshra.s32 %s1190, 7
        %s1196 = sand.u32 %s1190, 127
        %s1197 = sadd.s32 %s1194, %s1196
        %s1198 = sld [smem:[#allocation2 + %s1197]]
        %v1199 = vstv %s1198
        %v1200 = vsel %vm1178, %v1199, %v1132
        %s1201 = sadd.s32 %s1190, 1
        %s1202 = sshra.s32 %s1201, 7
        %s1203 = sand.u32 %s1201, 127
        %s1204 = sadd.s32 %s1202, %s24
        %s1205 = smul.u32 %s1204, 128
        %s1206 = sshra.s32 %s1201, 7
        %s1207 = sand.u32 %s1201, 127
        %s1208 = sadd.s32 %s1205, %s1207
        %s1209 = sld [smem:[#allocation2 + %s1208]]
        %v1210 = vstv %s1209
        %v1211 = vsel %vm1178, %v1210, %v1133
        %s1212 = sadd.s32 %s1190, 2
        %s1213 = sshra.s32 %s1212, 7
        %s1214 = sand.u32 %s1212, 127
        %s1215 = sadd.s32 %s1213, %s24
        %s1216 = smul.u32 %s1215, 128
        %s1217 = sshra.s32 %s1212, 7
        %s1218 = sand.u32 %s1212, 127
        %s1219 = sadd.s32 %s1216, %s1218
        %s1220 = sld [smem:[#allocation2 + %s1219]]
        %v1221 = vstv %s1220
        %v1222 = vsel %vm1178, %v1221, %v1134
        %s1223 = sadd.s32 %s1190, 3
        %s1224 = sshra.s32 %s1223, 7
        %s1225 = sand.u32 %s1223, 127
        %s1226 = sadd.s32 %s1224, %s24
        %s1227 = smul.u32 %s1226, 128
        %s1228 = sshra.s32 %s1223, 7
        %s1229 = sand.u32 %s1223, 127
        %s1230 = sadd.s32 %s1227, %s1229
        %s1231 = sld [smem:[#allocation2 + %s1230]]
        %v1232 = vstv %s1231
        %v1233 = vsel %vm1178, %v1232, %v1135
        %vm1234 = vcmp.lt.f32.partialorder %v1179, 0.5
        %v1235 = vsel %vm1234, 0, %v1189
        %vm1236 = vcmp.lt.f32.partialorder %v1179, 0.4
        %v1237 = vsel %vm1236, 1, 0
        %v1238 = vcvt.s32.f32 %v1237
        %vm1239 = vcmp.gt.s32.totalorder %v1235, 0
        %v1240 = vld [vmem:[#allocation9] sm:$0xff]
        %s1241 = scalar_lea.vmem [#allocation9], 8
        %v1242 = vld [vmem:[%s1241] sm:$0xff]
        %s1243 = scalar_lea.vmem [#allocation9], 16
        %v1244 = vld [vmem:[%s1243] sm:$0xff]
        %v1245 = vrcp.pop %v1244
        %v1246 = vmul.f32 %v1244, %v1245
        %v1247 = vsub.f32 1.0, %v1246
        %v1248 = vmul.f32 %v1245, %v1247
        %v1249 = vadd.f32 %v1245, %v1248
        %vm1250 = vweird.f32 %v1244
        %vm1251 = vweird.f32 %v1245
        %vm1252 = vmor %vm1250, %vm1251
        %v1253 = vsel %vm1252, %v1245, %v1249
        %v1254 = vand.u32 2147483647, %v1244
        %vm1255 = vcmp.eq.f32.partialorder %v1254, 8.507059e+37
        %v1256 = vand.u32 %v1244, 2147483648
        %v1257 = vor.u32 1.1754944e-38, %v1256
        %v1258 = vsel %vm1255, %v1257, %v1253
        %v1259 = vmul.f32 1.0, %v1258
        %s1260 = scalar_lea.vmem [#allocation9], 24
        %v1261 = vld [vmem:[%s1260] sm:$0xff]
        %v1262 = vrcp.pop %v1261
        %v1263 = vmul.f32 %v1261, %v1262
        %v1264 = vsub.f32 1.0, %v1263
        %v1265 = vmul.f32 %v1262, %v1264
        %v1266 = vadd.f32 %v1262, %v1265
        %vm1267 = vweird.f32 %v1261
        %vm1268 = vweird.f32 %v1262
        %vm1269 = vmor %vm1267, %vm1268
        %v1270 = vsel %vm1269, %v1262, %v1266
        %v1271 = vand.u32 2147483647, %v1261
        %vm1272 = vcmp.eq.f32.partialorder %v1271, 8.507059e+37
        %v1273 = vand.u32 %v1261, 2147483648
        %v1274 = vor.u32 1.1754944e-38, %v1273
        %v1275 = vsel %vm1272, %v1274, %v1270
        %v1276 = vmul.f32 1.0, %v1275
        %v1277 = vadd.f32 %v1200, %v1222
        %v1278 = vmul.f32 %v1277, 0.5
        %v1279 = vadd.f32 %v1211, %v1233
        %v1280 = vmul.f32 %v1279, 0.5
        %v1281 = vsub.f32 %v1222, %v1200
        %v1282 = vsub.f32 %v1233, %v1211
        %v1283 = vsub.f32 %v1278, %v1240
        %v1284 = vmul.f32 %v1259, 10.0
        %v1285 = vmul.f32 %v1283, %v1284
        %v1286 = vsub.f32 %v1280, %v1242
        %v1287 = vmul.f32 %v1276, 10.0
        %v1288 = vmul.f32 %v1286, %v1287
        %v1289 = vmul.f32 %v1281, %v1259
        %v1290 = vlog2.pop %v1289
        %v1291 = vmul.f32 %v1290, 0.6931472
        %v1292 = vmul.f32 %v1291, 5.0
        %v1293 = vmul.f32 %v1282, %v1276
        %v1294 = vlog2.pop %v1293
        %v1295 = vmul.f32 %v1294, 0.6931472
        %v1296 = vmul.f32 %v1295, 5.0
        %v1297 = vld [vmem:[%s323] sm:$0xff]
        %v1298 = vsub.f32 %v1297, %v1285
        %v1299 = vand.u32 2147483647, %v1298
        %vm1300 = vcmp.lt.f32.partialorder %v1299, 1.0
        %v1301 = vmul.f32 %v1298, 0.5
        %v1302 = vmul.f32 %v1301, %v1298
        %v1303 = vsub.f32 %v1299, 0.5
        %v1304 = vsel %vm1300, %v1302, %v1303
        %v1305 = vadd.f32 %v1304, 0.0
        %s1306 = scalar_lea.vmem %s323, 8 [#allocation11]
        %v1307 = vld [vmem:[%s1306] sm:$0xff]
        %v1308 = vsub.f32 %v1307, %v1288
        %v1309 = vand.u32 2147483647, %v1308
        %vm1310 = vcmp.lt.f32.partialorder %v1309, 1.0
        %v1311 = vmul.f32 %v1308, 0.5
        %v1312 = vmul.f32 %v1311, %v1308
        %v1313 = vsub.f32 %v1309, 0.5
        %v1314 = vsel %vm1310, %v1312, %v1313
        %v1315 = vadd.f32 %v1305, %v1314
        %s1316 = scalar_lea.vmem %s323, 16 [#allocation11]
        %v1317 = vld [vmem:[%s1316] sm:$0xff]
        %v1318 = vsub.f32 %v1317, %v1292
        %v1319 = vand.u32 2147483647, %v1318
        %vm1320 = vcmp.lt.f32.partialorder %v1319, 1.0
        %v1321 = vmul.f32 %v1318, 0.5
        %v1322 = vmul.f32 %v1321, %v1318
        %v1323 = vsub.f32 %v1319, 0.5
        %v1324 = vsel %vm1320, %v1322, %v1323
        %v1325 = vadd.f32 %v1315, %v1324
        %s1326 = scalar_lea.vmem %s323, 24 [#allocation11]
        %v1327 = vld [vmem:[%s1326] sm:$0xff]
        %v1328 = vsub.f32 %v1327, %v1296
        %v1329 = vand.u32 2147483647, %v1328
        %vm1330 = vcmp.lt.f32.partialorder %v1329, 1.0
        %v1331 = vmul.f32 %v1328, 0.5
        %v1332 = vmul.f32 %v1331, %v1328
        %v1333 = vsub.f32 %v1329, 0.5
        %v1334 = vsel %vm1330, %v1332, %v1333
        %v1335 = vadd.f32 %v1325, %v1334
        %v1336 = vsel %vm1239, %v1335, 0.0
        %v1337 = vld [vmem:[%s333] sm:$0xff]
        %s1338 = scalar_lea.vmem %s333, 8 [#allocation12]
        %v1339 = vld [vmem:[%s1338] sm:$0xff]
        %v1340 = vmax.f32 %v1337, %v1339
        %s1341 = scalar_lea.vmem %s333, 16 [#allocation12]
        %v1342 = vld [vmem:[%s1341] sm:$0xff]
        %v1343 = vmax.f32 %v1340, %v1342
        %s1344 = scalar_lea.vmem %s333, 24 [#allocation12]
        %v1345 = vld [vmem:[%s1344] sm:$0xff]
        %v1346 = vmax.f32 %v1343, %v1345
        %s1347 = scalar_lea.vmem %s333, 32 [#allocation12]
        %v1348 = vld [vmem:[%s1347] sm:$0xff]
        %v1349 = vmax.f32 %v1346, %v1348
        %s1350 = scalar_lea.vmem %s333, 40 [#allocation12]
        %v1351 = vld [vmem:[%s1350] sm:$0xff]
        %v1352 = vmax.f32 %v1349, %v1351
        %s1353 = scalar_lea.vmem %s333, 48 [#allocation12]
        %v1354 = vld [vmem:[%s1353] sm:$0xff]
        %v1355 = vmax.f32 %v1352, %v1354
        %s1356 = scalar_lea.vmem %s333, 56 [#allocation12]
        %v1357 = vld [vmem:[%s1356] sm:$0xff]
        %v1358 = vmax.f32 %v1355, %v1357
        %v1359 = vsub.f32 %v1337, %v1358
        %v1360 = vmul.f32 %v1359, 1.442695
        %v1361 = vpow.pop %v1360
        %v1362 = vadd.f32 %v1361, 0.0
        %vm1363 = vcmp.eq.s32.totalorder %v1235, 0
        %v1364 = vsel %vm1363, %v1337, 0.0
        %v1365 = vadd.f32 %v1364, 0.0
        %v1366 = vsub.f32 %v1339, %v1358
        %v1367 = vmul.f32 %v1366, 1.442695
        %v1368 = vpow.pop %v1367
        %v1369 = vadd.f32 %v1362, %v1368
        %vm1370 = vcmp.eq.s32.totalorder %v1235, 1
        %v1371 = vsel %vm1370, %v1339, 0.0
        %v1372 = vadd.f32 %v1365, %v1371
        %v1373 = vsub.f32 %v1342, %v1358
        %v1374 = vmul.f32 %v1373, 1.442695
        %v1375 = vpow.pop %v1374
        %v1376 = vadd.f32 %v1369, %v1375
        %vm1377 = vcmp.eq.s32.totalorder %v1235, 2
        %v1378 = vsel %vm1377, %v1342, 0.0
        %v1379 = vadd.f32 %v1372, %v1378
        %v1380 = vsub.f32 %v1345, %v1358
        %v1381 = vmul.f32 %v1380, 1.442695
        %v1382 = vpow.pop %v1381
        %v1383 = vadd.f32 %v1376, %v1382
        %vm1384 = vcmp.eq.s32.totalorder %v1235, 3
        %v1385 = vsel %vm1384, %v1345, 0.0
        %v1386 = vadd.f32 %v1379, %v1385
        %v1387 = vsub.f32 %v1348, %v1358
        %v1388 = vmul.f32 %v1387, 1.442695
        %v1389 = vpow.pop %v1388
        %v1390 = vadd.f32 %v1383, %v1389
        %vm1391 = vcmp.eq.s32.totalorder %v1235, 4
        %v1392 = vsel %vm1391, %v1348, 0.0
        %v1393 = vadd.f32 %v1386, %v1392
        %v1394 = vsub.f32 %v1351, %v1358
        %v1395 = vmul.f32 %v1394, 1.442695
        %v1396 = vpow.pop %v1395
        %v1397 = vadd.f32 %v1390, %v1396
        %vm1398 = vcmp.eq.s32.totalorder %v1235, 5
        %v1399 = vsel %vm1398, %v1351, 0.0
        %v1400 = vadd.f32 %v1393, %v1399
        %v1401 = vsub.f32 %v1354, %v1358
        %v1402 = vmul.f32 %v1401, 1.442695
        %v1403 = vpow.pop %v1402
        %v1404 = vadd.f32 %v1397, %v1403
        %vm1405 = vcmp.eq.s32.totalorder %v1235, 6
        %v1406 = vsel %vm1405, %v1354, 0.0
        %v1407 = vadd.f32 %v1400, %v1406
        %v1408 = vsub.f32 %v1357, %v1358
        %v1409 = vmul.f32 %v1408, 1.442695
        %v1410 = vpow.pop %v1409
        %v1411 = vadd.f32 %v1404, %v1410
        %vm1412 = vcmp.eq.s32.totalorder %v1235, 7
        %v1413 = vsel %vm1412, %v1357, 0.0
        %v1414 = vadd.f32 %v1407, %v1413
        %v1415 = vlog2.pop %v1411
        %v1416 = vmul.f32 %v1415, 0.6931472
        %v1417 = vadd.f32 %v1358, %v1416
        %v1418 = vsub.f32 %v1417, %v1414
        %1419 = vst [vmem:[%s368] sm:$0xff] %v1418
        %s1420 = scalar_lea.vmem %s368, 8 [#allocation13]
        %1421 = vst [vmem:[%s1420] sm:$0xff] %v1336
        %v1422 = vcvt.s32.f32 %v1235
        %s1423 = scalar_lea.vmem %s368, 16 [#allocation13]
        %1424 = vst [vmem:[%s1423] sm:$0xff] %v1422
        %s1425 = scalar_lea.vmem %s368, 24 [#allocation13]
        %1426 = vst [vmem:[%s1425] sm:$0xff] %v1238
        %s1427 = sand.u32 %s168, 1
        %s1428 = scalar_lea.sflag [#allocation4], %s1427
        %s1429 = sand.u32 %s168, 1
        %s1430 = smul.addr %s1429, 32
        %s1431 = scalar_lea.vmem [#allocation13], %s1430
        // Predicated region
        $region69: #{tpu_custom_call.1} parent=43 // pred_check
          %p1432 = pneg %p178
        $region70: #{tpu_custom_call.1} parent=43 // pred_check_branch
          %1434 = sbr.rel (%p1432) target = $region72
        $region71: #{tpu_custom_call.1} parent=43 // pred_region
          %1436 = vsyncadd %s1428, 0
          %s1437 = smul.addr %s24, 4
          %s1438 = smul.addr %s1437, 8
          %s1439 = scalar_lea.hbm %s6, %s1438
          %s1440 = sshll.u32 %s1431, 4
          %s1441 = int_to_ptr.vmem [resolvable:$true] %s1440
          %s1442 = sshll.u32 %s1439, 4
          %s1443 = int_to_ptr.hbm [resolvable:$true] %s1442
          %1448 = dma.vmem_to_hbm [thread:$0]  %s1441, 512, %s1443, %s1428, 128, 128, 8
        $region72: #{tpu_custom_call.1} parent=43 // pred_fallthru
          _
      $region44: #{tpu_custom_call.1} parent=5 // pred_fallthru
        _
      %p1449 = scmp.le.s32.totalorder 2, %s19
      // Predicated region
      $region73: #{tpu_custom_call.1} parent=5 // pred_check
        %p1450 = pneg %p1449
      $region74: #{tpu_custom_call.1} parent=5 // pred_check_branch
        %1452 = sbr.rel (%p1450) target = $region76
      $region75: #{tpu_custom_call.1} parent=5 // pred_region
        %s1453 = ssub.s32 %s19, 2
        // Predicated region
        $region77: #{tpu_custom_call.1} parent=75 // pred_check
          %p1454 = pneg %p184
        $region78: #{tpu_custom_call.1} parent=75 // pred_check_branch
          %1456 = sbr.rel (%p1454) target = $region80
        $region79: #{tpu_custom_call.1} parent=75 // pred_region
          %s1457 = sand.u32 %s169, 1
          %s1458 = scalar_lea.sflag [#allocation4], %s1457
          %s1459 = sand.u32 %s169, 1
          %s1460 = smul.addr %s1459, 32
          %s1461 = scalar_lea.vmem [#allocation13], %s1460
          %1463 = dma.done %s1458, 512
        $region80: #{tpu_custom_call.1} parent=75 // pred_fallthru
          _
      $region76: #{tpu_custom_call.1} parent=5 // pred_fallthru
        _
    $region6: #{tpu_custom_call.1} parent=1 // loop_footer
      %s23 = sadd.s32 1, %s19
    $region7: #{tpu_custom_call.1} parent=1 // loop_footer_branch
      %18 = sbr.rel target = $region3
    $region8: #{tpu_custom_call.1} parent=1 // loop_exit
      _
    %1464 = vsyncpa [#allocation3], 1
    %s1465 = scalar_lea.sflag [#allocation3], 1
    %1466 = vsyncpa %s1465, 1
    %1467 = vsyncpa [#allocation10], 1
    %1468 = vsyncpa [#allocation4], 1
    %s1469 = scalar_lea.sflag [#allocation4], 1
    %1470 = vsyncpa %s1469, 1
    %1471 = vsyncpa [#allocation5], 1
    %s1472 = scalar_lea.sflag [#allocation5], 1
    %1473 = vsyncpa %s1472, 1
    %1474 = vsyncpa [#allocation7], 1

</llo_original>
